<compile_context>
chip_gen: v6e
topology: v6e:2x2x1
jax: 0.10.0
libtpu: 0.0.40
codegen_flags: <defaults>
</compile_context>

<pallas_src>
import functools
import numpy as np
import jax
import jax.numpy as jnp
from jax.experimental import pallas as pl
from jax.experimental.pallas import tpu as pltpu

KSIZE = 5
PAD = 2
SCALE = 0.9
BLOCK_B = 8      # batch rows packed on the sublane axis per grid step

# Flat parameter vector layout (all f32):
#   [w1 (3*1*5) | b1 (3) | w2 (3*3*5) | b2 (3) | w3 (3*3*5) | b3 (3)]
_W1_OFF = 0
_B1_OFF = _W1_OFF + 3 * 1 * KSIZE
_W2_OFF = _B1_OFF + 3
_B2_OFF = _W2_OFF + 3 * 3 * KSIZE
_W3_OFF = _B2_OFF + 3
_B3_OFF = _W3_OFF + 3 * 3 * KSIZE
NPARAMS = _B3_OFF + 3


def _upsample_src_indices(t_in):
    """PyTorch nn.Upsample(scale_factor=0.9, mode='nearest') source indices.

    ATen (scale_factor given, recompute_scale_factor=None):
      src = min(floor(j * float32(1/scale_factor)), T-1), t_out = floor(0.9*T).
    """
    t_out = int(np.floor(t_in * SCALE))
    scale = np.float32(1.0 / SCALE)
    idx = np.minimum(
        np.floor(np.arange(t_out, dtype=np.float32) * scale),
        np.float32(t_in - 1)).astype(np.int32)
    return t_out, idx


def _gather_runs(idx):
    """Split static nearest-neighbor indices into (out_start, src_start, len)
    runs where the source index advances by exactly 1 -> contiguous copies."""
    runs = []
    start = 0
    n = len(idx)
    for j in range(1, n + 1):
        if j == n or int(idx[j]) != int(idx[j - 1]) + 1:
            runs.append((start, int(idx[start]), j - start))
            start = j
    return tuple(runs)


def _conv_relu_layer(hs, p_ref, w_off, b_off, cin, cout, t):
    """5-tap Conv1d (PyTorch cross-correlation, pad=2) + bias + ReLU.

    hs: list of `cin` (8, T) f32 slabs (batch on sublanes, time on lanes).
    Weights/biases are scalars read from the packed SMEM param vector.
    Loop order (ci, k) outermost keeps exactly one shifted view live.
    """
    # padded[ci][:, j] == hs[ci][:, j - PAD], zeros outside the valid range.
    zpad = hs[0][:, :PAD] * 0.0                   # tracer-derived zeros (8, 2)
    padded = [jnp.concatenate([zpad, h, zpad], axis=-1) for h in hs]
    accs = [None] * cout
    for ci in range(cin):
        for k in range(KSIZE):
            sv = padded[ci][:, k:k + t]           # the single live shifted view
            for co in range(cout):
                w = p_ref[w_off + (co * cin + ci) * KSIZE + k]
                term = w * sv
                accs[co] = term if accs[co] is None else accs[co] + term
    # Bias added once after the tap sum (matches PyTorch), then ReLU.
    return [jnp.maximum(accs[co] + p_ref[b_off + co], 0.0) for co in range(cout)]


def _encoder1_kernel(p_ref, x_ref, o_ref, *, t_in, t_out, runs):
    x = x_ref[...].astype(jnp.float32)                          # (8, T)
    h = _conv_relu_layer([x], p_ref, _W1_OFF, _B1_OFF, 1, 3, t_in)
    h = _conv_relu_layer(h, p_ref, _W2_OFF, _B2_OFF, 3, 3, t_in)
    h = _conv_relu_layer(h, p_ref, _W3_OFF, _B3_OFF, 3, 3, t_in)
    # 0.9x nearest upsample: static consecutive-source runs -> contiguous
    # lane-slice copies straight into the channel-stacked output block.
    for c in range(3):
        base = c * t_out
        for (oa, ia, n) in runs:
            o_ref[:, base + oa:base + oa + n] = h[c][:, ia:ia + n]


def encoder1_forward(original, params):
    """original: (B, 1, T) f32 (PyTorch NCW). Returns (B, 3, floor(0.9*T)) f32."""
    w1, b1, w2, b2, w3, b3 = params
    B, cin, T = original.shape
    assert cin == 1

    t_out, src_idx = _upsample_src_indices(T)
    runs = _gather_runs(src_idx)

    # Pack batch onto sublanes; pad rows up to a multiple of 8.
    b_pad = ((B + BLOCK_B - 1) // BLOCK_B) * BLOCK_B
    x = jnp.squeeze(original, axis=1).astype(jnp.float32)       # (B, T)
    if b_pad != B:
        x = jnp.pad(x, ((0, b_pad - B), (0, 0)))

    pvec = jnp.concatenate(
        [w1.reshape(-1), b1, w2.reshape(-1), b2, w3.reshape(-1), b3]
    ).astype(jnp.float32)
    assert pvec.shape == (NPARAMS,)

    kernel = functools.partial(_encoder1_kernel, t_in=T, t_out=t_out, runs=runs)

    out = pl.pallas_call(
        kernel,
        out_shape=jax.ShapeDtypeStruct((b_pad, 3 * t_out), jnp.float32),
        grid=(b_pad // BLOCK_B,),
        in_specs=[
            # Single packed param vector, whole-array resident in SMEM.
            pl.BlockSpec(memory_space=pltpu.MemorySpace.SMEM),
            pl.BlockSpec((BLOCK_B, T), lambda i: (i, 0)),
        ],
        out_specs=pl.BlockSpec((BLOCK_B, 3 * t_out), lambda i: (i, 0)),
        compiler_params=pltpu.CompilerParams(
            dimension_semantics=("parallel",)),
    )(pvec, x)

    # Channel-stacked lanes -> (B, 3, t_out): free last-dim split, no transpose.
    return out[:B].reshape(B, 3, t_out)


def encoder1_reference(original, params):
    """Pure-JAX reference (lax conv == PyTorch Conv1d cross-correlation)."""
    w1, b1, w2, b2, w3, b3 = params

    def conv_relu(h, w, b):
        y = jax.lax.conv_general_dilated(
            h, w, window_strides=(1,), padding=[(PAD, PAD)],
            dimension_numbers=("NCH", "OIH", "NCH"))
        return jax.nn.relu(y + b[None, :, None])

    h = conv_relu(original, w1, b1)
    h = conv_relu(h, w2, b2)
    h = conv_relu(h, w3, b3)
    _, idx = _upsample_src_indices(original.shape[-1])
    return jnp.take(h, jnp.asarray(idx), axis=-1)


def make_params(key):
    ks = jax.random.split(key, 6)
    w1 = 0.3 * jax.random.normal(ks[0], (3, 1, KSIZE), jnp.float32)
    b1 = 0.1 * jax.random.normal(ks[1], (3,), jnp.float32)
    w2 = 0.3 * jax.random.normal(ks[2], (3, 3, KSIZE), jnp.float32)
    b2 = 0.1 * jax.random.normal(ks[3], (3,), jnp.float32)
    w3 = 0.3 * jax.random.normal(ks[4], (3, 3, KSIZE), jnp.float32)
    b3 = 0.1 * jax.random.normal(ks[5], (3,), jnp.float32)
    return (w1, b1, w2, b2, w3, b3)


if __name__ == "__main__":
    key = jax.random.PRNGKey(0)
    pkey, xkey = jax.random.split(key)
    params = make_params(pkey)

    B, T = 2, 16
    original = jax.random.normal(xkey, (B, 1, T), jnp.float32)   # NCW, like PyTorch

    out = jax.block_until_ready(encoder1_forward(original, params))
    ref = jax.block_until_ready(encoder1_reference(original, params))

    assert out.shape == (B, 3, int(np.floor(T * SCALE)))
    np.testing.assert_allclose(np.asarray(out), np.asarray(ref),
                               rtol=1e-5, atol=1e-5)
    print("KERNEL_OK")
</pallas_src>

<mosaic_0001>
module attributes {stable_mosaic.version = 11 : i64} {
  func.func @_encoder1_kernel(%arg0: i32, %arg1: memref<114xf32, #tpu.memory_space<smem>>, %arg2: memref<8x16xf32, #tpu.memory_space<vmem>>, %arg3: memref<8x42xf32, #tpu.memory_space<vmem>>) attributes {dimension_semantics = [#tpu.dimension_semantics<parallel>], iteration_bounds = array<i64: 1>, scalar_prefetch = 0 : i64, scratch_operands = 0 : i64, tpu.core_type = #tpu.core_type<tc>, window_params = [{transform_indices = @transform_0, window_bounds = array<i64: 114>}, {transform_indices = @transform_1, window_bounds = array<i64: 8, 16>}, {transform_indices = @transform_2, window_bounds = array<i64: 8, 42>}]} {
    %c0 = arith.constant 0 : index
    %c0_0 = arith.constant 0 : index
    %0 = vector.load %arg2[%c0, %c0_0] : memref<8x16xf32, #tpu.memory_space<vmem>>, vector<8x16xf32>
    %1 = vector.extract_strided_slice %0 {offsets = [0, 0], sizes = [8, 2], strides = [1, 1]} : vector<8x16xf32> to vector<8x2xf32>
    %cst = arith.constant 0.000000e+00 : f32
    %2 = vector.broadcast %cst : f32 to vector<8x2xf32>
    %3 = arith.mulf %1, %2 : vector<8x2xf32>
    %4 = tpu.concatenate %3, %0, %3 in 1 : vector<8x2xf32>, vector<8x16xf32>, vector<8x2xf32> -> vector<8x20xf32>
    %5 = vector.extract_strided_slice %4 {offsets = [0, 0], sizes = [8, 16], strides = [1, 1]} : vector<8x20xf32> to vector<8x16xf32>
    %c0_1 = arith.constant 0 : index
    %6 = memref.load %arg1[%c0_1] : memref<114xf32, #tpu.memory_space<smem>>
    %7 = vector.broadcast %6 : f32 to vector<8x16xf32>
    %8 = arith.mulf %7, %5 : vector<8x16xf32>
    %c5 = arith.constant 5 : index
    %9 = memref.load %arg1[%c5] : memref<114xf32, #tpu.memory_space<smem>>
    %10 = vector.broadcast %9 : f32 to vector<8x16xf32>
    %11 = arith.mulf %10, %5 : vector<8x16xf32>
    %c10 = arith.constant 10 : index
    %12 = memref.load %arg1[%c10] : memref<114xf32, #tpu.memory_space<smem>>
    %13 = vector.broadcast %12 : f32 to vector<8x16xf32>
    %14 = arith.mulf %13, %5 : vector<8x16xf32>
    %15 = vector.extract_strided_slice %4 {offsets = [0, 1], sizes = [8, 16], strides = [1, 1]} : vector<8x20xf32> to vector<8x16xf32>
    %c1 = arith.constant 1 : index
    %16 = memref.load %arg1[%c1] : memref<114xf32, #tpu.memory_space<smem>>
    %17 = vector.broadcast %16 : f32 to vector<8x16xf32>
    %18 = arith.mulf %17, %15 : vector<8x16xf32>
    %19 = arith.addf %8, %18 : vector<8x16xf32>
    %c6 = arith.constant 6 : index
    %20 = memref.load %arg1[%c6] : memref<114xf32, #tpu.memory_space<smem>>
    %21 = vector.broadcast %20 : f32 to vector<8x16xf32>
    %22 = arith.mulf %21, %15 : vector<8x16xf32>
    %23 = arith.addf %11, %22 : vector<8x16xf32>
    %c11 = arith.constant 11 : index
    %24 = memref.load %arg1[%c11] : memref<114xf32, #tpu.memory_space<smem>>
    %25 = vector.broadcast %24 : f32 to vector<8x16xf32>
    %26 = arith.mulf %25, %15 : vector<8x16xf32>
    %27 = arith.addf %14, %26 : vector<8x16xf32>
    %28 = vector.extract_strided_slice %4 {offsets = [0, 2], sizes = [8, 16], strides = [1, 1]} : vector<8x20xf32> to vector<8x16xf32>
    %c2 = arith.constant 2 : index
    %29 = memref.load %arg1[%c2] : memref<114xf32, #tpu.memory_space<smem>>
    %30 = vector.broadcast %29 : f32 to vector<8x16xf32>
    %31 = arith.mulf %30, %28 : vector<8x16xf32>
    %32 = arith.addf %19, %31 : vector<8x16xf32>
    %c7 = arith.constant 7 : index
    %33 = memref.load %arg1[%c7] : memref<114xf32, #tpu.memory_space<smem>>
    %34 = vector.broadcast %33 : f32 to vector<8x16xf32>
    %35 = arith.mulf %34, %28 : vector<8x16xf32>
    %36 = arith.addf %23, %35 : vector<8x16xf32>
    %c12 = arith.constant 12 : index
    %37 = memref.load %arg1[%c12] : memref<114xf32, #tpu.memory_space<smem>>
    %38 = vector.broadcast %37 : f32 to vector<8x16xf32>
    %39 = arith.mulf %38, %28 : vector<8x16xf32>
    %40 = arith.addf %27, %39 : vector<8x16xf32>
    %41 = vector.extract_strided_slice %4 {offsets = [0, 3], sizes = [8, 16], strides = [1, 1]} : vector<8x20xf32> to vector<8x16xf32>
    %c3 = arith.constant 3 : index
    %42 = memref.load %arg1[%c3] : memref<114xf32, #tpu.memory_space<smem>>
    %43 = vector.broadcast %42 : f32 to vector<8x16xf32>
    %44 = arith.mulf %43, %41 : vector<8x16xf32>
    %45 = arith.addf %32, %44 : vector<8x16xf32>
    %c8 = arith.constant 8 : index
    %46 = memref.load %arg1[%c8] : memref<114xf32, #tpu.memory_space<smem>>
    %47 = vector.broadcast %46 : f32 to vector<8x16xf32>
    %48 = arith.mulf %47, %41 : vector<8x16xf32>
    %49 = arith.addf %36, %48 : vector<8x16xf32>
    %c13 = arith.constant 13 : index
    %50 = memref.load %arg1[%c13] : memref<114xf32, #tpu.memory_space<smem>>
    %51 = vector.broadcast %50 : f32 to vector<8x16xf32>
    %52 = arith.mulf %51, %41 : vector<8x16xf32>
    %53 = arith.addf %40, %52 : vector<8x16xf32>
    %54 = vector.extract_strided_slice %4 {offsets = [0, 4], sizes = [8, 16], strides = [1, 1]} : vector<8x20xf32> to vector<8x16xf32>
    %c4 = arith.constant 4 : index
    %55 = memref.load %arg1[%c4] : memref<114xf32, #tpu.memory_space<smem>>
    %56 = vector.broadcast %55 : f32 to vector<8x16xf32>
    %57 = arith.mulf %56, %54 : vector<8x16xf32>
    %58 = arith.addf %45, %57 : vector<8x16xf32>
    %c9 = arith.constant 9 : index
    %59 = memref.load %arg1[%c9] : memref<114xf32, #tpu.memory_space<smem>>
    %60 = vector.broadcast %59 : f32 to vector<8x16xf32>
    %61 = arith.mulf %60, %54 : vector<8x16xf32>
    %62 = arith.addf %49, %61 : vector<8x16xf32>
    %c14 = arith.constant 14 : index
    %63 = memref.load %arg1[%c14] : memref<114xf32, #tpu.memory_space<smem>>
    %64 = vector.broadcast %63 : f32 to vector<8x16xf32>
    %65 = arith.mulf %64, %54 : vector<8x16xf32>
    %66 = arith.addf %53, %65 : vector<8x16xf32>
    %c15 = arith.constant 15 : index
    %67 = memref.load %arg1[%c15] : memref<114xf32, #tpu.memory_space<smem>>
    %68 = vector.broadcast %67 : f32 to vector<8x16xf32>
    %69 = arith.addf %58, %68 : vector<8x16xf32>
    %cst_2 = arith.constant 0.000000e+00 : f32
    %70 = vector.broadcast %cst_2 : f32 to vector<8x16xf32>
    %71 = arith.maximumf %69, %70 : vector<8x16xf32>
    %c16 = arith.constant 16 : index
    %72 = memref.load %arg1[%c16] : memref<114xf32, #tpu.memory_space<smem>>
    %73 = vector.broadcast %72 : f32 to vector<8x16xf32>
    %74 = arith.addf %62, %73 : vector<8x16xf32>
    %cst_3 = arith.constant 0.000000e+00 : f32
    %75 = vector.broadcast %cst_3 : f32 to vector<8x16xf32>
    %76 = arith.maximumf %74, %75 : vector<8x16xf32>
    %c17 = arith.constant 17 : index
    %77 = memref.load %arg1[%c17] : memref<114xf32, #tpu.memory_space<smem>>
    %78 = vector.broadcast %77 : f32 to vector<8x16xf32>
    %79 = arith.addf %66, %78 : vector<8x16xf32>
    %cst_4 = arith.constant 0.000000e+00 : f32
    %80 = vector.broadcast %cst_4 : f32 to vector<8x16xf32>
    %81 = arith.maximumf %79, %80 : vector<8x16xf32>
    %82 = vector.extract_strided_slice %71 {offsets = [0, 0], sizes = [8, 2], strides = [1, 1]} : vector<8x16xf32> to vector<8x2xf32>
    %cst_5 = arith.constant 0.000000e+00 : f32
    %83 = vector.broadcast %cst_5 : f32 to vector<8x2xf32>
    %84 = arith.mulf %82, %83 : vector<8x2xf32>
    %85 = tpu.concatenate %84, %71, %84 in 1 : vector<8x2xf32>, vector<8x16xf32>, vector<8x2xf32> -> vector<8x20xf32>
    %86 = tpu.concatenate %84, %76, %84 in 1 : vector<8x2xf32>, vector<8x16xf32>, vector<8x2xf32> -> vector<8x20xf32>
    %87 = tpu.concatenate %84, %81, %84 in 1 : vector<8x2xf32>, vector<8x16xf32>, vector<8x2xf32> -> vector<8x20xf32>
    %88 = vector.extract_strided_slice %85 {offsets = [0, 0], sizes = [8, 16], strides = [1, 1]} : vector<8x20xf32> to vector<8x16xf32>
    %c18 = arith.constant 18 : index
    %89 = memref.load %arg1[%c18] : memref<114xf32, #tpu.memory_space<smem>>
    %90 = vector.broadcast %89 : f32 to vector<8x16xf32>
    %91 = arith.mulf %90, %88 : vector<8x16xf32>
    %c33 = arith.constant 33 : index
    %92 = memref.load %arg1[%c33] : memref<114xf32, #tpu.memory_space<smem>>
    %93 = vector.broadcast %92 : f32 to vector<8x16xf32>
    %94 = arith.mulf %93, %88 : vector<8x16xf32>
    %c48 = arith.constant 48 : index
    %95 = memref.load %arg1[%c48] : memref<114xf32, #tpu.memory_space<smem>>
    %96 = vector.broadcast %95 : f32 to vector<8x16xf32>
    %97 = arith.mulf %96, %88 : vector<8x16xf32>
    %98 = vector.extract_strided_slice %85 {offsets = [0, 1], sizes = [8, 16], strides = [1, 1]} : vector<8x20xf32> to vector<8x16xf32>
    %c19 = arith.constant 19 : index
    %99 = memref.load %arg1[%c19] : memref<114xf32, #tpu.memory_space<smem>>
    %100 = vector.broadcast %99 : f32 to vector<8x16xf32>
    %101 = arith.mulf %100, %98 : vector<8x16xf32>
    %102 = arith.addf %91, %101 : vector<8x16xf32>
    %c34 = arith.constant 34 : index
    %103 = memref.load %arg1[%c34] : memref<114xf32, #tpu.memory_space<smem>>
    %104 = vector.broadcast %103 : f32 to vector<8x16xf32>
    %105 = arith.mulf %104, %98 : vector<8x16xf32>
    %106 = arith.addf %94, %105 : vector<8x16xf32>
    %c49 = arith.constant 49 : index
    %107 = memref.load %arg1[%c49] : memref<114xf32, #tpu.memory_space<smem>>
    %108 = vector.broadcast %107 : f32 to vector<8x16xf32>
    %109 = arith.mulf %108, %98 : vector<8x16xf32>
    %110 = arith.addf %97, %109 : vector<8x16xf32>
    %111 = vector.extract_strided_slice %85 {offsets = [0, 2], sizes = [8, 16], strides = [1, 1]} : vector<8x20xf32> to vector<8x16xf32>
    %c20 = arith.constant 20 : index
    %112 = memref.load %arg1[%c20] : memref<114xf32, #tpu.memory_space<smem>>
    %113 = vector.broadcast %112 : f32 to vector<8x16xf32>
    %114 = arith.mulf %113, %111 : vector<8x16xf32>
    %115 = arith.addf %102, %114 : vector<8x16xf32>
    %c35 = arith.constant 35 : index
    %116 = memref.load %arg1[%c35] : memref<114xf32, #tpu.memory_space<smem>>
    %117 = vector.broadcast %116 : f32 to vector<8x16xf32>
    %118 = arith.mulf %117, %111 : vector<8x16xf32>
    %119 = arith.addf %106, %118 : vector<8x16xf32>
    %c50 = arith.constant 50 : index
    %120 = memref.load %arg1[%c50] : memref<114xf32, #tpu.memory_space<smem>>
    %121 = vector.broadcast %120 : f32 to vector<8x16xf32>
    %122 = arith.mulf %121, %111 : vector<8x16xf32>
    %123 = arith.addf %110, %122 : vector<8x16xf32>
    %124 = vector.extract_strided_slice %85 {offsets = [0, 3], sizes = [8, 16], strides = [1, 1]} : vector<8x20xf32> to vector<8x16xf32>
    %c21 = arith.constant 21 : index
    %125 = memref.load %arg1[%c21] : memref<114xf32, #tpu.memory_space<smem>>
    %126 = vector.broadcast %125 : f32 to vector<8x16xf32>
    %127 = arith.mulf %126, %124 : vector<8x16xf32>
    %128 = arith.addf %115, %127 : vector<8x16xf32>
    %c36 = arith.constant 36 : index
    %129 = memref.load %arg1[%c36] : memref<114xf32, #tpu.memory_space<smem>>
    %130 = vector.broadcast %129 : f32 to vector<8x16xf32>
    %131 = arith.mulf %130, %124 : vector<8x16xf32>
    %132 = arith.addf %119, %131 : vector<8x16xf32>
    %c51 = arith.constant 51 : index
    %133 = memref.load %arg1[%c51] : memref<114xf32, #tpu.memory_space<smem>>
    %134 = vector.broadcast %133 : f32 to vector<8x16xf32>
    %135 = arith.mulf %134, %124 : vector<8x16xf32>
    %136 = arith.addf %123, %135 : vector<8x16xf32>
    %137 = vector.extract_strided_slice %85 {offsets = [0, 4], sizes = [8, 16], strides = [1, 1]} : vector<8x20xf32> to vector<8x16xf32>
    %c22 = arith.constant 22 : index
    %138 = memref.load %arg1[%c22] : memref<114xf32, #tpu.memory_space<smem>>
    %139 = vector.broadcast %138 : f32 to vector<8x16xf32>
    %140 = arith.mulf %139, %137 : vector<8x16xf32>
    %141 = arith.addf %128, %140 : vector<8x16xf32>
    %c37 = arith.constant 37 : index
    %142 = memref.load %arg1[%c37] : memref<114xf32, #tpu.memory_space<smem>>
    %143 = vector.broadcast %142 : f32 to vector<8x16xf32>
    %144 = arith.mulf %143, %137 : vector<8x16xf32>
    %145 = arith.addf %132, %144 : vector<8x16xf32>
    %c52 = arith.constant 52 : index
    %146 = memref.load %arg1[%c52] : memref<114xf32, #tpu.memory_space<smem>>
    %147 = vector.broadcast %146 : f32 to vector<8x16xf32>
    %148 = arith.mulf %147, %137 : vector<8x16xf32>
    %149 = arith.addf %136, %148 : vector<8x16xf32>
    %150 = vector.extract_strided_slice %86 {offsets = [0, 0], sizes = [8, 16], strides = [1, 1]} : vector<8x20xf32> to vector<8x16xf32>
    %c23 = arith.constant 23 : index
    %151 = memref.load %arg1[%c23] : memref<114xf32, #tpu.memory_space<smem>>
    %152 = vector.broadcast %151 : f32 to vector<8x16xf32>
    %153 = arith.mulf %152, %150 : vector<8x16xf32>
    %154 = arith.addf %141, %153 : vector<8x16xf32>
    %c38 = arith.constant 38 : index
    %155 = memref.load %arg1[%c38] : memref<114xf32, #tpu.memory_space<smem>>
    %156 = vector.broadcast %155 : f32 to vector<8x16xf32>
    %157 = arith.mulf %156, %150 : vector<8x16xf32>
    %158 = arith.addf %145, %157 : vector<8x16xf32>
    %c53 = arith.constant 53 : index
    %159 = memref.load %arg1[%c53] : memref<114xf32, #tpu.memory_space<smem>>
    %160 = vector.broadcast %159 : f32 to vector<8x16xf32>
    %161 = arith.mulf %160, %150 : vector<8x16xf32>
    %162 = arith.addf %149, %161 : vector<8x16xf32>
    %163 = vector.extract_strided_slice %86 {offsets = [0, 1], sizes = [8, 16], strides = [1, 1]} : vector<8x20xf32> to vector<8x16xf32>
    %c24 = arith.constant 24 : index
    %164 = memref.load %arg1[%c24] : memref<114xf32, #tpu.memory_space<smem>>
    %165 = vector.broadcast %164 : f32 to vector<8x16xf32>
    %166 = arith.mulf %165, %163 : vector<8x16xf32>
    %167 = arith.addf %154, %166 : vector<8x16xf32>
    %c39 = arith.constant 39 : index
    %168 = memref.load %arg1[%c39] : memref<114xf32, #tpu.memory_space<smem>>
    %169 = vector.broadcast %168 : f32 to vector<8x16xf32>
    %170 = arith.mulf %169, %163 : vector<8x16xf32>
    %171 = arith.addf %158, %170 : vector<8x16xf32>
    %c54 = arith.constant 54 : index
    %172 = memref.load %arg1[%c54] : memref<114xf32, #tpu.memory_space<smem>>
    %173 = vector.broadcast %172 : f32 to vector<8x16xf32>
    %174 = arith.mulf %173, %163 : vector<8x16xf32>
    %175 = arith.addf %162, %174 : vector<8x16xf32>
    %176 = vector.extract_strided_slice %86 {offsets = [0, 2], sizes = [8, 16], strides = [1, 1]} : vector<8x20xf32> to vector<8x16xf32>
    %c25 = arith.constant 25 : index
    %177 = memref.load %arg1[%c25] : memref<114xf32, #tpu.memory_space<smem>>
    %178 = vector.broadcast %177 : f32 to vector<8x16xf32>
    %179 = arith.mulf %178, %176 : vector<8x16xf32>
    %180 = arith.addf %167, %179 : vector<8x16xf32>
    %c40 = arith.constant 40 : index
    %181 = memref.load %arg1[%c40] : memref<114xf32, #tpu.memory_space<smem>>
    %182 = vector.broadcast %181 : f32 to vector<8x16xf32>
    %183 = arith.mulf %182, %176 : vector<8x16xf32>
    %184 = arith.addf %171, %183 : vector<8x16xf32>
    %c55 = arith.constant 55 : index
    %185 = memref.load %arg1[%c55] : memref<114xf32, #tpu.memory_space<smem>>
    %186 = vector.broadcast %185 : f32 to vector<8x16xf32>
    %187 = arith.mulf %186, %176 : vector<8x16xf32>
    %188 = arith.addf %175, %187 : vector<8x16xf32>
    %189 = vector.extract_strided_slice %86 {offsets = [0, 3], sizes = [8, 16], strides = [1, 1]} : vector<8x20xf32> to vector<8x16xf32>
    %c26 = arith.constant 26 : index
    %190 = memref.load %arg1[%c26] : memref<114xf32, #tpu.memory_space<smem>>
    %191 = vector.broadcast %190 : f32 to vector<8x16xf32>
    %192 = arith.mulf %191, %189 : vector<8x16xf32>
    %193 = arith.addf %180, %192 : vector<8x16xf32>
    %c41 = arith.constant 41 : index
    %194 = memref.load %arg1[%c41] : memref<114xf32, #tpu.memory_space<smem>>
    %195 = vector.broadcast %194 : f32 to vector<8x16xf32>
    %196 = arith.mulf %195, %189 : vector<8x16xf32>
    %197 = arith.addf %184, %196 : vector<8x16xf32>
    %c56 = arith.constant 56 : index
    %198 = memref.load %arg1[%c56] : memref<114xf32, #tpu.memory_space<smem>>
    %199 = vector.broadcast %198 : f32 to vector<8x16xf32>
    %200 = arith.mulf %199, %189 : vector<8x16xf32>
    %201 = arith.addf %188, %200 : vector<8x16xf32>
    %202 = vector.extract_strided_slice %86 {offsets = [0, 4], sizes = [8, 16], strides = [1, 1]} : vector<8x20xf32> to vector<8x16xf32>
    %c27 = arith.constant 27 : index
    %203 = memref.load %arg1[%c27] : memref<114xf32, #tpu.memory_space<smem>>
    %204 = vector.broadcast %203 : f32 to vector<8x16xf32>
    %205 = arith.mulf %204, %202 : vector<8x16xf32>
    %206 = arith.addf %193, %205 : vector<8x16xf32>
    %c42 = arith.constant 42 : index
    %207 = memref.load %arg1[%c42] : memref<114xf32, #tpu.memory_space<smem>>
    %208 = vector.broadcast %207 : f32 to vector<8x16xf32>
    %209 = arith.mulf %208, %202 : vector<8x16xf32>
    %210 = arith.addf %197, %209 : vector<8x16xf32>
    %c57 = arith.constant 57 : index
    %211 = memref.load %arg1[%c57] : memref<114xf32, #tpu.memory_space<smem>>
    %212 = vector.broadcast %211 : f32 to vector<8x16xf32>
    %213 = arith.mulf %212, %202 : vector<8x16xf32>
    %214 = arith.addf %201, %213 : vector<8x16xf32>
    %215 = vector.extract_strided_slice %87 {offsets = [0, 0], sizes = [8, 16], strides = [1, 1]} : vector<8x20xf32> to vector<8x16xf32>
    %c28 = arith.constant 28 : index
    %216 = memref.load %arg1[%c28] : memref<114xf32, #tpu.memory_space<smem>>
    %217 = vector.broadcast %216 : f32 to vector<8x16xf32>
    %218 = arith.mulf %217, %215 : vector<8x16xf32>
    %219 = arith.addf %206, %218 : vector<8x16xf32>
    %c43 = arith.constant 43 : index
    %220 = memref.load %arg1[%c43] : memref<114xf32, #tpu.memory_space<smem>>
    %221 = vector.broadcast %220 : f32 to vector<8x16xf32>
    %222 = arith.mulf %221, %215 : vector<8x16xf32>
    %223 = arith.addf %210, %222 : vector<8x16xf32>
    %c58 = arith.constant 58 : index
    %224 = memref.load %arg1[%c58] : memref<114xf32, #tpu.memory_space<smem>>
    %225 = vector.broadcast %224 : f32 to vector<8x16xf32>
    %226 = arith.mulf %225, %215 : vector<8x16xf32>
    %227 = arith.addf %214, %226 : vector<8x16xf32>
    %228 = vector.extract_strided_slice %87 {offsets = [0, 1], sizes = [8, 16], strides = [1, 1]} : vector<8x20xf32> to vector<8x16xf32>
    %c29 = arith.constant 29 : index
    %229 = memref.load %arg1[%c29] : memref<114xf32, #tpu.memory_space<smem>>
    %230 = vector.broadcast %229 : f32 to vector<8x16xf32>
    %231 = arith.mulf %230, %228 : vector<8x16xf32>
    %232 = arith.addf %219, %231 : vector<8x16xf32>
    %c44 = arith.constant 44 : index
    %233 = memref.load %arg1[%c44] : memref<114xf32, #tpu.memory_space<smem>>
    %234 = vector.broadcast %233 : f32 to vector<8x16xf32>
    %235 = arith.mulf %234, %228 : vector<8x16xf32>
    %236 = arith.addf %223, %235 : vector<8x16xf32>
    %c59 = arith.constant 59 : index
    %237 = memref.load %arg1[%c59] : memref<114xf32, #tpu.memory_space<smem>>
    %238 = vector.broadcast %237 : f32 to vector<8x16xf32>
    %239 = arith.mulf %238, %228 : vector<8x16xf32>
    %240 = arith.addf %227, %239 : vector<8x16xf32>
    %241 = vector.extract_strided_slice %87 {offsets = [0, 2], sizes = [8, 16], strides = [1, 1]} : vector<8x20xf32> to vector<8x16xf32>
    %c30 = arith.constant 30 : index
    %242 = memref.load %arg1[%c30] : memref<114xf32, #tpu.memory_space<smem>>
    %243 = vector.broadcast %242 : f32 to vector<8x16xf32>
    %244 = arith.mulf %243, %241 : vector<8x16xf32>
    %245 = arith.addf %232, %244 : vector<8x16xf32>
    %c45 = arith.constant 45 : index
    %246 = memref.load %arg1[%c45] : memref<114xf32, #tpu.memory_space<smem>>
    %247 = vector.broadcast %246 : f32 to vector<8x16xf32>
    %248 = arith.mulf %247, %241 : vector<8x16xf32>
    %249 = arith.addf %236, %248 : vector<8x16xf32>
    %c60 = arith.constant 60 : index
    %250 = memref.load %arg1[%c60] : memref<114xf32, #tpu.memory_space<smem>>
    %251 = vector.broadcast %250 : f32 to vector<8x16xf32>
    %252 = arith.mulf %251, %241 : vector<8x16xf32>
    %253 = arith.addf %240, %252 : vector<8x16xf32>
    %254 = vector.extract_strided_slice %87 {offsets = [0, 3], sizes = [8, 16], strides = [1, 1]} : vector<8x20xf32> to vector<8x16xf32>
    %c31 = arith.constant 31 : index
    %255 = memref.load %arg1[%c31] : memref<114xf32, #tpu.memory_space<smem>>
    %256 = vector.broadcast %255 : f32 to vector<8x16xf32>
    %257 = arith.mulf %256, %254 : vector<8x16xf32>
    %258 = arith.addf %245, %257 : vector<8x16xf32>
    %c46 = arith.constant 46 : index
    %259 = memref.load %arg1[%c46] : memref<114xf32, #tpu.memory_space<smem>>
    %260 = vector.broadcast %259 : f32 to vector<8x16xf32>
    %261 = arith.mulf %260, %254 : vector<8x16xf32>
    %262 = arith.addf %249, %261 : vector<8x16xf32>
    %c61 = arith.constant 61 : index
    %263 = memref.load %arg1[%c61] : memref<114xf32, #tpu.memory_space<smem>>
    %264 = vector.broadcast %263 : f32 to vector<8x16xf32>
    %265 = arith.mulf %264, %254 : vector<8x16xf32>
    %266 = arith.addf %253, %265 : vector<8x16xf32>
    %267 = vector.extract_strided_slice %87 {offsets = [0, 4], sizes = [8, 16], strides = [1, 1]} : vector<8x20xf32> to vector<8x16xf32>
    %c32 = arith.constant 32 : index
    %268 = memref.load %arg1[%c32] : memref<114xf32, #tpu.memory_space<smem>>
    %269 = vector.broadcast %268 : f32 to vector<8x16xf32>
    %270 = arith.mulf %269, %267 : vector<8x16xf32>
    %271 = arith.addf %258, %270 : vector<8x16xf32>
    %c47 = arith.constant 47 : index
    %272 = memref.load %arg1[%c47] : memref<114xf32, #tpu.memory_space<smem>>
    %273 = vector.broadcast %272 : f32 to vector<8x16xf32>
    %274 = arith.mulf %273, %267 : vector<8x16xf32>
    %275 = arith.addf %262, %274 : vector<8x16xf32>
    %c62 = arith.constant 62 : index
    %276 = memref.load %arg1[%c62] : memref<114xf32, #tpu.memory_space<smem>>
    %277 = vector.broadcast %276 : f32 to vector<8x16xf32>
    %278 = arith.mulf %277, %267 : vector<8x16xf32>
    %279 = arith.addf %266, %278 : vector<8x16xf32>
    %c63 = arith.constant 63 : index
    %280 = memref.load %arg1[%c63] : memref<114xf32, #tpu.memory_space<smem>>
    %281 = vector.broadcast %280 : f32 to vector<8x16xf32>
    %282 = arith.addf %271, %281 : vector<8x16xf32>
    %cst_6 = arith.constant 0.000000e+00 : f32
    %283 = vector.broadcast %cst_6 : f32 to vector<8x16xf32>
    %284 = arith.maximumf %282, %283 : vector<8x16xf32>
    %c64 = arith.constant 64 : index
    %285 = memref.load %arg1[%c64] : memref<114xf32, #tpu.memory_space<smem>>
    %286 = vector.broadcast %285 : f32 to vector<8x16xf32>
    %287 = arith.addf %275, %286 : vector<8x16xf32>
    %cst_7 = arith.constant 0.000000e+00 : f32
    %288 = vector.broadcast %cst_7 : f32 to vector<8x16xf32>
    %289 = arith.maximumf %287, %288 : vector<8x16xf32>
    %c65 = arith.constant 65 : index
    %290 = memref.load %arg1[%c65] : memref<114xf32, #tpu.memory_space<smem>>
    %291 = vector.broadcast %290 : f32 to vector<8x16xf32>
    %292 = arith.addf %279, %291 : vector<8x16xf32>
    %cst_8 = arith.constant 0.000000e+00 : f32
    %293 = vector.broadcast %cst_8 : f32 to vector<8x16xf32>
    %294 = arith.maximumf %292, %293 : vector<8x16xf32>
    %295 = vector.extract_strided_slice %284 {offsets = [0, 0], sizes = [8, 2], strides = [1, 1]} : vector<8x16xf32> to vector<8x2xf32>
    %cst_9 = arith.constant 0.000000e+00 : f32
    %296 = vector.broadcast %cst_9 : f32 to vector<8x2xf32>
    %297 = arith.mulf %295, %296 : vector<8x2xf32>
    %298 = tpu.concatenate %297, %284, %297 in 1 : vector<8x2xf32>, vector<8x16xf32>, vector<8x2xf32> -> vector<8x20xf32>
    %299 = tpu.concatenate %297, %289, %297 in 1 : vector<8x2xf32>, vector<8x16xf32>, vector<8x2xf32> -> vector<8x20xf32>
    %300 = tpu.concatenate %297, %294, %297 in 1 : vector<8x2xf32>, vector<8x16xf32>, vector<8x2xf32> -> vector<8x20xf32>
    %301 = vector.extract_strided_slice %298 {offsets = [0, 0], sizes = [8, 16], strides = [1, 1]} : vector<8x20xf32> to vector<8x16xf32>
    %c66 = arith.constant 66 : index
    %302 = memref.load %arg1[%c66] : memref<114xf32, #tpu.memory_space<smem>>
    %303 = vector.broadcast %302 : f32 to vector<8x16xf32>
    %304 = arith.mulf %303, %301 : vector<8x16xf32>
    %c81 = arith.constant 81 : index
    %305 = memref.load %arg1[%c81] : memref<114xf32, #tpu.memory_space<smem>>
    %306 = vector.broadcast %305 : f32 to vector<8x16xf32>
    %307 = arith.mulf %306, %301 : vector<8x16xf32>
    %c96 = arith.constant 96 : index
    %308 = memref.load %arg1[%c96] : memref<114xf32, #tpu.memory_space<smem>>
    %309 = vector.broadcast %308 : f32 to vector<8x16xf32>
    %310 = arith.mulf %309, %301 : vector<8x16xf32>
    %311 = vector.extract_strided_slice %298 {offsets = [0, 1], sizes = [8, 16], strides = [1, 1]} : vector<8x20xf32> to vector<8x16xf32>
    %c67 = arith.constant 67 : index
    %312 = memref.load %arg1[%c67] : memref<114xf32, #tpu.memory_space<smem>>
    %313 = vector.broadcast %312 : f32 to vector<8x16xf32>
    %314 = arith.mulf %313, %311 : vector<8x16xf32>
    %315 = arith.addf %304, %314 : vector<8x16xf32>
    %c82 = arith.constant 82 : index
    %316 = memref.load %arg1[%c82] : memref<114xf32, #tpu.memory_space<smem>>
    %317 = vector.broadcast %316 : f32 to vector<8x16xf32>
    %318 = arith.mulf %317, %311 : vector<8x16xf32>
    %319 = arith.addf %307, %318 : vector<8x16xf32>
    %c97 = arith.constant 97 : index
    %320 = memref.load %arg1[%c97] : memref<114xf32, #tpu.memory_space<smem>>
    %321 = vector.broadcast %320 : f32 to vector<8x16xf32>
    %322 = arith.mulf %321, %311 : vector<8x16xf32>
    %323 = arith.addf %310, %322 : vector<8x16xf32>
    %324 = vector.extract_strided_slice %298 {offsets = [0, 2], sizes = [8, 16], strides = [1, 1]} : vector<8x20xf32> to vector<8x16xf32>
    %c68 = arith.constant 68 : index
    %325 = memref.load %arg1[%c68] : memref<114xf32, #tpu.memory_space<smem>>
    %326 = vector.broadcast %325 : f32 to vector<8x16xf32>
    %327 = arith.mulf %326, %324 : vector<8x16xf32>
    %328 = arith.addf %315, %327 : vector<8x16xf32>
    %c83 = arith.constant 83 : index
    %329 = memref.load %arg1[%c83] : memref<114xf32, #tpu.memory_space<smem>>
    %330 = vector.broadcast %329 : f32 to vector<8x16xf32>
    %331 = arith.mulf %330, %324 : vector<8x16xf32>
    %332 = arith.addf %319, %331 : vector<8x16xf32>
    %c98 = arith.constant 98 : index
    %333 = memref.load %arg1[%c98] : memref<114xf32, #tpu.memory_space<smem>>
    %334 = vector.broadcast %333 : f32 to vector<8x16xf32>
    %335 = arith.mulf %334, %324 : vector<8x16xf32>
    %336 = arith.addf %323, %335 : vector<8x16xf32>
    %337 = vector.extract_strided_slice %298 {offsets = [0, 3], sizes = [8, 16], strides = [1, 1]} : vector<8x20xf32> to vector<8x16xf32>
    %c69 = arith.constant 69 : index
    %338 = memref.load %arg1[%c69] : memref<114xf32, #tpu.memory_space<smem>>
    %339 = vector.broadcast %338 : f32 to vector<8x16xf32>
    %340 = arith.mulf %339, %337 : vector<8x16xf32>
    %341 = arith.addf %328, %340 : vector<8x16xf32>
    %c84 = arith.constant 84 : index
    %342 = memref.load %arg1[%c84] : memref<114xf32, #tpu.memory_space<smem>>
    %343 = vector.broadcast %342 : f32 to vector<8x16xf32>
    %344 = arith.mulf %343, %337 : vector<8x16xf32>
    %345 = arith.addf %332, %344 : vector<8x16xf32>
    %c99 = arith.constant 99 : index
    %346 = memref.load %arg1[%c99] : memref<114xf32, #tpu.memory_space<smem>>
    %347 = vector.broadcast %346 : f32 to vector<8x16xf32>
    %348 = arith.mulf %347, %337 : vector<8x16xf32>
    %349 = arith.addf %336, %348 : vector<8x16xf32>
    %350 = vector.extract_strided_slice %298 {offsets = [0, 4], sizes = [8, 16], strides = [1, 1]} : vector<8x20xf32> to vector<8x16xf32>
    %c70 = arith.constant 70 : index
    %351 = memref.load %arg1[%c70] : memref<114xf32, #tpu.memory_space<smem>>
    %352 = vector.broadcast %351 : f32 to vector<8x16xf32>
    %353 = arith.mulf %352, %350 : vector<8x16xf32>
    %354 = arith.addf %341, %353 : vector<8x16xf32>
    %c85 = arith.constant 85 : index
    %355 = memref.load %arg1[%c85] : memref<114xf32, #tpu.memory_space<smem>>
    %356 = vector.broadcast %355 : f32 to vector<8x16xf32>
    %357 = arith.mulf %356, %350 : vector<8x16xf32>
    %358 = arith.addf %345, %357 : vector<8x16xf32>
    %c100 = arith.constant 100 : index
    %359 = memref.load %arg1[%c100] : memref<114xf32, #tpu.memory_space<smem>>
    %360 = vector.broadcast %359 : f32 to vector<8x16xf32>
    %361 = arith.mulf %360, %350 : vector<8x16xf32>
    %362 = arith.addf %349, %361 : vector<8x16xf32>
    %363 = vector.extract_strided_slice %299 {offsets = [0, 0], sizes = [8, 16], strides = [1, 1]} : vector<8x20xf32> to vector<8x16xf32>
    %c71 = arith.constant 71 : index
    %364 = memref.load %arg1[%c71] : memref<114xf32, #tpu.memory_space<smem>>
    %365 = vector.broadcast %364 : f32 to vector<8x16xf32>
    %366 = arith.mulf %365, %363 : vector<8x16xf32>
    %367 = arith.addf %354, %366 : vector<8x16xf32>
    %c86 = arith.constant 86 : index
    %368 = memref.load %arg1[%c86] : memref<114xf32, #tpu.memory_space<smem>>
    %369 = vector.broadcast %368 : f32 to vector<8x16xf32>
    %370 = arith.mulf %369, %363 : vector<8x16xf32>
    %371 = arith.addf %358, %370 : vector<8x16xf32>
    %c101 = arith.constant 101 : index
    %372 = memref.load %arg1[%c101] : memref<114xf32, #tpu.memory_space<smem>>
    %373 = vector.broadcast %372 : f32 to vector<8x16xf32>
    %374 = arith.mulf %373, %363 : vector<8x16xf32>
    %375 = arith.addf %362, %374 : vector<8x16xf32>
    %376 = vector.extract_strided_slice %299 {offsets = [0, 1], sizes = [8, 16], strides = [1, 1]} : vector<8x20xf32> to vector<8x16xf32>
    %c72 = arith.constant 72 : index
    %377 = memref.load %arg1[%c72] : memref<114xf32, #tpu.memory_space<smem>>
    %378 = vector.broadcast %377 : f32 to vector<8x16xf32>
    %379 = arith.mulf %378, %376 : vector<8x16xf32>
    %380 = arith.addf %367, %379 : vector<8x16xf32>
    %c87 = arith.constant 87 : index
    %381 = memref.load %arg1[%c87] : memref<114xf32, #tpu.memory_space<smem>>
    %382 = vector.broadcast %381 : f32 to vector<8x16xf32>
    %383 = arith.mulf %382, %376 : vector<8x16xf32>
    %384 = arith.addf %371, %383 : vector<8x16xf32>
    %c102 = arith.constant 102 : index
    %385 = memref.load %arg1[%c102] : memref<114xf32, #tpu.memory_space<smem>>
    %386 = vector.broadcast %385 : f32 to vector<8x16xf32>
    %387 = arith.mulf %386, %376 : vector<8x16xf32>
    %388 = arith.addf %375, %387 : vector<8x16xf32>
    %389 = vector.extract_strided_slice %299 {offsets = [0, 2], sizes = [8, 16], strides = [1, 1]} : vector<8x20xf32> to vector<8x16xf32>
    %c73 = arith.constant 73 : index
    %390 = memref.load %arg1[%c73] : memref<114xf32, #tpu.memory_space<smem>>
    %391 = vector.broadcast %390 : f32 to vector<8x16xf32>
    %392 = arith.mulf %391, %389 : vector<8x16xf32>
    %393 = arith.addf %380, %392 : vector<8x16xf32>
    %c88 = arith.constant 88 : index
    %394 = memref.load %arg1[%c88] : memref<114xf32, #tpu.memory_space<smem>>
    %395 = vector.broadcast %394 : f32 to vector<8x16xf32>
    %396 = arith.mulf %395, %389 : vector<8x16xf32>
    %397 = arith.addf %384, %396 : vector<8x16xf32>
    %c103 = arith.constant 103 : index
    %398 = memref.load %arg1[%c103] : memref<114xf32, #tpu.memory_space<smem>>
    %399 = vector.broadcast %398 : f32 to vector<8x16xf32>
    %400 = arith.mulf %399, %389 : vector<8x16xf32>
    %401 = arith.addf %388, %400 : vector<8x16xf32>
    %402 = vector.extract_strided_slice %299 {offsets = [0, 3], sizes = [8, 16], strides = [1, 1]} : vector<8x20xf32> to vector<8x16xf32>
    %c74 = arith.constant 74 : index
    %403 = memref.load %arg1[%c74] : memref<114xf32, #tpu.memory_space<smem>>
    %404 = vector.broadcast %403 : f32 to vector<8x16xf32>
    %405 = arith.mulf %404, %402 : vector<8x16xf32>
    %406 = arith.addf %393, %405 : vector<8x16xf32>
    %c89 = arith.constant 89 : index
    %407 = memref.load %arg1[%c89] : memref<114xf32, #tpu.memory_space<smem>>
    %408 = vector.broadcast %407 : f32 to vector<8x16xf32>
    %409 = arith.mulf %408, %402 : vector<8x16xf32>
    %410 = arith.addf %397, %409 : vector<8x16xf32>
    %c104 = arith.constant 104 : index
    %411 = memref.load %arg1[%c104] : memref<114xf32, #tpu.memory_space<smem>>
    %412 = vector.broadcast %411 : f32 to vector<8x16xf32>
    %413 = arith.mulf %412, %402 : vector<8x16xf32>
    %414 = arith.addf %401, %413 : vector<8x16xf32>
    %415 = vector.extract_strided_slice %299 {offsets = [0, 4], sizes = [8, 16], strides = [1, 1]} : vector<8x20xf32> to vector<8x16xf32>
    %c75 = arith.constant 75 : index
    %416 = memref.load %arg1[%c75] : memref<114xf32, #tpu.memory_space<smem>>
    %417 = vector.broadcast %416 : f32 to vector<8x16xf32>
    %418 = arith.mulf %417, %415 : vector<8x16xf32>
    %419 = arith.addf %406, %418 : vector<8x16xf32>
    %c90 = arith.constant 90 : index
    %420 = memref.load %arg1[%c90] : memref<114xf32, #tpu.memory_space<smem>>
    %421 = vector.broadcast %420 : f32 to vector<8x16xf32>
    %422 = arith.mulf %421, %415 : vector<8x16xf32>
    %423 = arith.addf %410, %422 : vector<8x16xf32>
    %c105 = arith.constant 105 : index
    %424 = memref.load %arg1[%c105] : memref<114xf32, #tpu.memory_space<smem>>
    %425 = vector.broadcast %424 : f32 to vector<8x16xf32>
    %426 = arith.mulf %425, %415 : vector<8x16xf32>
    %427 = arith.addf %414, %426 : vector<8x16xf32>
    %428 = vector.extract_strided_slice %300 {offsets = [0, 0], sizes = [8, 16], strides = [1, 1]} : vector<8x20xf32> to vector<8x16xf32>
    %c76 = arith.constant 76 : index
    %429 = memref.load %arg1[%c76] : memref<114xf32, #tpu.memory_space<smem>>
    %430 = vector.broadcast %429 : f32 to vector<8x16xf32>
    %431 = arith.mulf %430, %428 : vector<8x16xf32>
    %432 = arith.addf %419, %431 : vector<8x16xf32>
    %c91 = arith.constant 91 : index
    %433 = memref.load %arg1[%c91] : memref<114xf32, #tpu.memory_space<smem>>
    %434 = vector.broadcast %433 : f32 to vector<8x16xf32>
    %435 = arith.mulf %434, %428 : vector<8x16xf32>
    %436 = arith.addf %423, %435 : vector<8x16xf32>
    %c106 = arith.constant 106 : index
    %437 = memref.load %arg1[%c106] : memref<114xf32, #tpu.memory_space<smem>>
    %438 = vector.broadcast %437 : f32 to vector<8x16xf32>
    %439 = arith.mulf %438, %428 : vector<8x16xf32>
    %440 = arith.addf %427, %439 : vector<8x16xf32>
    %441 = vector.extract_strided_slice %300 {offsets = [0, 1], sizes = [8, 16], strides = [1, 1]} : vector<8x20xf32> to vector<8x16xf32>
    %c77 = arith.constant 77 : index
    %442 = memref.load %arg1[%c77] : memref<114xf32, #tpu.memory_space<smem>>
    %443 = vector.broadcast %442 : f32 to vector<8x16xf32>
    %444 = arith.mulf %443, %441 : vector<8x16xf32>
    %445 = arith.addf %432, %444 : vector<8x16xf32>
    %c92 = arith.constant 92 : index
    %446 = memref.load %arg1[%c92] : memref<114xf32, #tpu.memory_space<smem>>
    %447 = vector.broadcast %446 : f32 to vector<8x16xf32>
    %448 = arith.mulf %447, %441 : vector<8x16xf32>
    %449 = arith.addf %436, %448 : vector<8x16xf32>
    %c107 = arith.constant 107 : index
    %450 = memref.load %arg1[%c107] : memref<114xf32, #tpu.memory_space<smem>>
    %451 = vector.broadcast %450 : f32 to vector<8x16xf32>
    %452 = arith.mulf %451, %441 : vector<8x16xf32>
    %453 = arith.addf %440, %452 : vector<8x16xf32>
    %454 = vector.extract_strided_slice %300 {offsets = [0, 2], sizes = [8, 16], strides = [1, 1]} : vector<8x20xf32> to vector<8x16xf32>
    %c78 = arith.constant 78 : index
    %455 = memref.load %arg1[%c78] : memref<114xf32, #tpu.memory_space<smem>>
    %456 = vector.broadcast %455 : f32 to vector<8x16xf32>
    %457 = arith.mulf %456, %454 : vector<8x16xf32>
    %458 = arith.addf %445, %457 : vector<8x16xf32>
    %c93 = arith.constant 93 : index
    %459 = memref.load %arg1[%c93] : memref<114xf32, #tpu.memory_space<smem>>
    %460 = vector.broadcast %459 : f32 to vector<8x16xf32>
    %461 = arith.mulf %460, %454 : vector<8x16xf32>
    %462 = arith.addf %449, %461 : vector<8x16xf32>
    %c108 = arith.constant 108 : index
    %463 = memref.load %arg1[%c108] : memref<114xf32, #tpu.memory_space<smem>>
    %464 = vector.broadcast %463 : f32 to vector<8x16xf32>
    %465 = arith.mulf %464, %454 : vector<8x16xf32>
    %466 = arith.addf %453, %465 : vector<8x16xf32>
    %467 = vector.extract_strided_slice %300 {offsets = [0, 3], sizes = [8, 16], strides = [1, 1]} : vector<8x20xf32> to vector<8x16xf32>
    %c79 = arith.constant 79 : index
    %468 = memref.load %arg1[%c79] : memref<114xf32, #tpu.memory_space<smem>>
    %469 = vector.broadcast %468 : f32 to vector<8x16xf32>
    %470 = arith.mulf %469, %467 : vector<8x16xf32>
    %471 = arith.addf %458, %470 : vector<8x16xf32>
    %c94 = arith.constant 94 : index
    %472 = memref.load %arg1[%c94] : memref<114xf32, #tpu.memory_space<smem>>
    %473 = vector.broadcast %472 : f32 to vector<8x16xf32>
    %474 = arith.mulf %473, %467 : vector<8x16xf32>
    %475 = arith.addf %462, %474 : vector<8x16xf32>
    %c109 = arith.constant 109 : index
    %476 = memref.load %arg1[%c109] : memref<114xf32, #tpu.memory_space<smem>>
    %477 = vector.broadcast %476 : f32 to vector<8x16xf32>
    %478 = arith.mulf %477, %467 : vector<8x16xf32>
    %479 = arith.addf %466, %478 : vector<8x16xf32>
    %480 = vector.extract_strided_slice %300 {offsets = [0, 4], sizes = [8, 16], strides = [1, 1]} : vector<8x20xf32> to vector<8x16xf32>
    %c80 = arith.constant 80 : index
    %481 = memref.load %arg1[%c80] : memref<114xf32, #tpu.memory_space<smem>>
    %482 = vector.broadcast %481 : f32 to vector<8x16xf32>
    %483 = arith.mulf %482, %480 : vector<8x16xf32>
    %484 = arith.addf %471, %483 : vector<8x16xf32>
    %c95 = arith.constant 95 : index
    %485 = memref.load %arg1[%c95] : memref<114xf32, #tpu.memory_space<smem>>
    %486 = vector.broadcast %485 : f32 to vector<8x16xf32>
    %487 = arith.mulf %486, %480 : vector<8x16xf32>
    %488 = arith.addf %475, %487 : vector<8x16xf32>
    %c110 = arith.constant 110 : index
    %489 = memref.load %arg1[%c110] : memref<114xf32, #tpu.memory_space<smem>>
    %490 = vector.broadcast %489 : f32 to vector<8x16xf32>
    %491 = arith.mulf %490, %480 : vector<8x16xf32>
    %492 = arith.addf %479, %491 : vector<8x16xf32>
    %c111 = arith.constant 111 : index
    %493 = memref.load %arg1[%c111] : memref<114xf32, #tpu.memory_space<smem>>
    %494 = vector.broadcast %493 : f32 to vector<8x16xf32>
    %495 = arith.addf %484, %494 : vector<8x16xf32>
    %cst_10 = arith.constant 0.000000e+00 : f32
    %496 = vector.broadcast %cst_10 : f32 to vector<8x16xf32>
    %497 = arith.maximumf %495, %496 : vector<8x16xf32>
    %c112 = arith.constant 112 : index
    %498 = memref.load %arg1[%c112] : memref<114xf32, #tpu.memory_space<smem>>
    %499 = vector.broadcast %498 : f32 to vector<8x16xf32>
    %500 = arith.addf %488, %499 : vector<8x16xf32>
    %cst_11 = arith.constant 0.000000e+00 : f32
    %501 = vector.broadcast %cst_11 : f32 to vector<8x16xf32>
    %502 = arith.maximumf %500, %501 : vector<8x16xf32>
    %c113 = arith.constant 113 : index
    %503 = memref.load %arg1[%c113] : memref<114xf32, #tpu.memory_space<smem>>
    %504 = vector.broadcast %503 : f32 to vector<8x16xf32>
    %505 = arith.addf %492, %504 : vector<8x16xf32>
    %cst_12 = arith.constant 0.000000e+00 : f32
    %506 = vector.broadcast %cst_12 : f32 to vector<8x16xf32>
    %507 = arith.maximumf %505, %506 : vector<8x16xf32>
    %508 = vector.extract_strided_slice %497 {offsets = [0, 0], sizes = [8, 9], strides = [1, 1]} : vector<8x16xf32> to vector<8x9xf32>
    %c0_13 = arith.constant 0 : index
    %c0_14 = arith.constant 0 : index
    %509 = vector.load %arg3[%c0_13, %c0_14] : memref<8x42xf32, #tpu.memory_space<vmem>>, vector<8x9xf32>
    tpu.vector_store %arg3[%c0_13, %c0_14], %508 {strides = array<i32>} : memref<8x42xf32, #tpu.memory_space<vmem>>, vector<8x9xf32>,
    %510 = vector.extract_strided_slice %497 {offsets = [0, 10], sizes = [8, 5], strides = [1, 1]} : vector<8x16xf32> to vector<8x5xf32>
    %c0_15 = arith.constant 0 : index
    %c9_16 = arith.constant 9 : index
    %511 = vector.load %arg3[%c0_15, %c9_16] : memref<8x42xf32, #tpu.memory_space<vmem>>, vector<8x5xf32>
    tpu.vector_store %arg3[%c0_15, %c9_16], %510 {strides = array<i32>} : memref<8x42xf32, #tpu.memory_space<vmem>>, vector<8x5xf32>,
    %512 = vector.extract_strided_slice %502 {offsets = [0, 0], sizes = [8, 9], strides = [1, 1]} : vector<8x16xf32> to vector<8x9xf32>
    %c0_17 = arith.constant 0 : index
    %c14_18 = arith.constant 14 : index
    %513 = vector.load %arg3[%c0_17, %c14_18] : memref<8x42xf32, #tpu.memory_space<vmem>>, vector<8x9xf32>
    tpu.vector_store %arg3[%c0_17, %c14_18], %512 {strides = array<i32>} : memref<8x42xf32, #tpu.memory_space<vmem>>, vector<8x9xf32>,
    %514 = vector.extract_strided_slice %502 {offsets = [0, 10], sizes = [8, 5], strides = [1, 1]} : vector<8x16xf32> to vector<8x5xf32>
    %c0_19 = arith.constant 0 : index
    %c23_20 = arith.constant 23 : index
    %515 = vector.load %arg3[%c0_19, %c23_20] : memref<8x42xf32, #tpu.memory_space<vmem>>, vector<8x5xf32>
    tpu.vector_store %arg3[%c0_19, %c23_20], %514 {strides = array<i32>} : memref<8x42xf32, #tpu.memory_space<vmem>>, vector<8x5xf32>,
    %516 = vector.extract_strided_slice %507 {offsets = [0, 0], sizes = [8, 9], strides = [1, 1]} : vector<8x16xf32> to vector<8x9xf32>
    %c0_21 = arith.constant 0 : index
    %c28_22 = arith.constant 28 : index
    %517 = vector.load %arg3[%c0_21, %c28_22] : memref<8x42xf32, #tpu.memory_space<vmem>>, vector<8x9xf32>
    tpu.vector_store %arg3[%c0_21, %c28_22], %516 {strides = array<i32>} : memref<8x42xf32, #tpu.memory_space<vmem>>, vector<8x9xf32>,
    %518 = vector.extract_strided_slice %507 {offsets = [0, 10], sizes = [8, 5], strides = [1, 1]} : vector<8x16xf32> to vector<8x5xf32>
    %c0_23 = arith.constant 0 : index
    %c37_24 = arith.constant 37 : index
    %519 = vector.load %arg3[%c0_23, %c37_24] : memref<8x42xf32, #tpu.memory_space<vmem>>, vector<8x5xf32>
    tpu.vector_store %arg3[%c0_23, %c37_24], %518 {strides = array<i32>} : memref<8x42xf32, #tpu.memory_space<vmem>>, vector<8x5xf32>,
    return
  }
  func.func @transform_0(%arg0: i32) -> i32 {
    %c0_i32 = arith.constant 0 : i32
    %c0_i32_0 = arith.constant 0 : i32
    return %c0_i32 : i32
  }
  func.func @transform_1(%arg0: i32) -> (i32, i32) {
    %c0_i32 = arith.constant 0 : i32
    %c0_i32_0 = arith.constant 0 : i32
    return %arg0, %c0_i32 : i32, i32
  }
  func.func @transform_2(%arg0: i32) -> (i32, i32) {
    %c0_i32 = arith.constant 0 : i32
    %c0_i32_0 = arith.constant 0 : i32
    return %arg0, %c0_i32 : i32, i32
  }
}

</mosaic_0001>

<llo_original>
// kernel: tpu_custom_call.1
$region0: #{tpu_custom_call.1}
  #allocation0 [shape = 'u32[]', space=smem, size = 0x4, offset = 0x4, fixed_abs, tag = 'smem constant byte address 0x4 - core index']
  #allocation1 [shape = 'u32[144,128]{1,0:T(1,128)}', space=vmem, size = 0x12000, scoped, tag = 'internal scratch']
  %s0 = inlined_call_operand.hbm [shape: f32[114], index: 0, kind: input, shape index: {}]
  %s1 = inlined_call_operand.hbm [shape: f32[8,16], index: 1, kind: input, shape index: {}]
  %s2 = inlined_call_operand.hbm [shape: f32[8,42], index: 2, kind: output, shape index: {}]
  %s3 = sld [smem:[#allocation0]]
  $region26: #{tpu_custom_call.1} parent=0
    _
  %s5 = ssub.s32 1, %s3
  %s6 = scalar_select 0, %s5, %s3
  $region1: #{tpu_custom_call.1} parent=0
    #allocation2 [shape = 'u8[512]{0}', space=smem, size = 0x200, scoped, tag = 'input window, operand 0, single buffered']
    #allocation3 [shape = 's32[1]{0}', space=sflag, size = 0x4, scoped, tag = 'scoped memory for tpu_custom_call.1']
    #allocation4 [shape = 's32[1]{0}', space=sflag, size = 0x4, scoped, tag = 'scoped memory for tpu_custom_call.1']
    #allocation5 [shape = 's32[1]{0}', space=sflag, size = 0x4, scoped, tag = 'scoped memory for tpu_custom_call.1']
    #allocation6 [shape = 'u8[4096]{0}', space=vmem, size = 0x1000, scoped, tag = 'input window, operand 1, single buffered']
    #allocation7 [shape = 'u8[4096]{0}', space=vmem, size = 0x1000, scoped, tag = 'output window, operand 0, single buffered']
    %7 = vsyncpa [#allocation5], 0
    %8 = vsyncpa [#allocation3], 0
    %9 = vsyncpa [#allocation4], 0
    // Predicated region
    $region2: #{tpu_custom_call.1} parent=1 // pred_check
      _
    $region3: #{tpu_custom_call.1} parent=1 // pred_check_branch
      %11 = sbr.rel (0) target = $region5
    $region4: #{tpu_custom_call.1} parent=1 // pred_region
      %s13 = ssub.s32 16, 16
      %14 = vsyncadd [#allocation5], %s13
      %17 = dma.hbm_to_smem %s0, 16, [#allocation2], [#allocation5]
    $region5: #{tpu_custom_call.1} parent=1 // pred_fallthru
      _
    // Predicated region
    $region6: #{tpu_custom_call.1} parent=1 // pred_check
      _
    $region7: #{tpu_custom_call.1} parent=1 // pred_check_branch
      %19 = sbr.rel (0) target = $region9
    $region8: #{tpu_custom_call.1} parent=1 // pred_region
      %s21 = ssub.s32 128, 128
      %22 = vsyncadd [#allocation3], %s21
      %s24 = sshll.u32 [#allocation6], 4
      %s25 = int_to_ptr.vmem [resolvable:$true] %s24
      %27 = dma.hbm_to_vmem [thread:$0]  %s1, 128, %s25, [#allocation3]
    $region9: #{tpu_custom_call.1} parent=1 // pred_fallthru
      _
    // Predicated region
    $region10: #{tpu_custom_call.1} parent=1 // pred_check
      _
    $region11: #{tpu_custom_call.1} parent=1 // pred_check_branch
      %29 = sbr.rel (0) target = $region13
    $region12: #{tpu_custom_call.1} parent=1 // pred_region
      %30 = dma.done [#allocation5], 16
    $region13: #{tpu_custom_call.1} parent=1 // pred_fallthru
      _
    // Predicated region
    $region14: #{tpu_custom_call.1} parent=1 // pred_check
      _
    $region15: #{tpu_custom_call.1} parent=1 // pred_check_branch
      %32 = sbr.rel (0) target = $region17
    $region16: #{tpu_custom_call.1} parent=1 // pred_region
      %33 = dma.done [#allocation3], 128
    $region17: #{tpu_custom_call.1} parent=1 // pred_fallthru
      _
    %34 = sfence
    %v35 = vld [vmem:[#allocation6] sm:$0xff]
    %v36 = vmul.f32 %v35, 0.0
    %38 = vrot.lane.b32.xlu0 %v35, 2
    %v39 = vpop.permute.xlu0 %38
    %42 = vrot.lane.b32.xlu0 %v36, 18
    %v43 = vpop.permute.xlu0 %42
    %vm45 = vcmask 15360
    %v46 = vsel %vm45, %v36, %v39
    %vm47 = vcmask 146432
    %v48 = vsel %vm47, %v46, %v43
    %s49 = sld [smem:[#allocation2]]
    %v50 = vstv %s49
    %v51 = vmul.f32 %v50, %v48
    %s52 = sld [smem:[#allocation2 + $0x5]]
    %v53 = vstv %s52
    %v54 = vmul.f32 %v53, %v48
    %s55 = sld [smem:[#allocation2 + $0xa]]
    %v56 = vstv %s55
    %v57 = vmul.f32 %v56, %v48
    %s58 = sld [smem:[#allocation2 + $0x1]]
    %v59 = vstv %s58
    %v60 = vmul.f32 %v59, %v48
    %62 = vrot.lane.b32.xlu0 %v60, 127
    %v63 = vpop.permute.xlu0 %62
    %v65 = vadd.f32 %v51, %v63
    %s66 = sld [smem:[#allocation2 + $0x6]]
    %v67 = vstv %s66
    %v68 = vmul.f32 %v67, %v48
    %70 = vrot.lane.b32.xlu0 %v68, 127
    %v71 = vpop.permute.xlu0 %70
    %v73 = vadd.f32 %v54, %v71
    %s74 = sld [smem:[#allocation2 + $0xb]]
    %v75 = vstv %s74
    %v76 = vmul.f32 %v75, %v48
    %78 = vrot.lane.b32.xlu0 %v76, 127
    %v79 = vpop.permute.xlu0 %78
    %v81 = vadd.f32 %v57, %v79
    %s82 = sld [smem:[#allocation2 + $0x2]]
    %v83 = vstv %s82
    %v84 = vmul.f32 %v83, %v48
    %86 = vrot.lane.b32.xlu0 %v84, 126
    %v87 = vpop.permute.xlu0 %86
    %v89 = vadd.f32 %v65, %v87
    %s90 = sld [smem:[#allocation2 + $0x7]]
    %v91 = vstv %s90
    %v92 = vmul.f32 %v91, %v48
    %94 = vrot.lane.b32.xlu0 %v92, 126
    %v95 = vpop.permute.xlu0 %94
    %v97 = vadd.f32 %v73, %v95
    %s98 = sld [smem:[#allocation2 + $0xc]]
    %v99 = vstv %s98
    %v100 = vmul.f32 %v99, %v48
    %102 = vrot.lane.b32.xlu0 %v100, 126
    %v103 = vpop.permute.xlu0 %102
    %v105 = vadd.f32 %v81, %v103
    %s106 = sld [smem:[#allocation2 + $0x3]]
    %v107 = vstv %s106
    %v108 = vmul.f32 %v107, %v48
    %110 = vrot.lane.b32.xlu0 %v108, 125
    %v111 = vpop.permute.xlu0 %110
    %v113 = vadd.f32 %v89, %v111
    %s114 = sld [smem:[#allocation2 + $0x8]]
    %v115 = vstv %s114
    %v116 = vmul.f32 %v115, %v48
    %118 = vrot.lane.b32.xlu0 %v116, 125
    %v119 = vpop.permute.xlu0 %118
    %v121 = vadd.f32 %v97, %v119
    %s122 = sld [smem:[#allocation2 + $0xd]]
    %v123 = vstv %s122
    %v124 = vmul.f32 %v123, %v48
    %126 = vrot.lane.b32.xlu0 %v124, 125
    %v127 = vpop.permute.xlu0 %126
    %v129 = vadd.f32 %v105, %v127
    %s130 = sld [smem:[#allocation2 + $0x4]]
    %v131 = vstv %s130
    %v132 = vmul.f32 %v131, %v48
    %134 = vrot.lane.b32.xlu0 %v132, 124
    %v135 = vpop.permute.xlu0 %134
    %v137 = vadd.f32 %v113, %v135
    %s138 = sld [smem:[#allocation2 + $0x9]]
    %v139 = vstv %s138
    %v140 = vmul.f32 %v139, %v48
    %142 = vrot.lane.b32.xlu0 %v140, 124
    %v143 = vpop.permute.xlu0 %142
    %v145 = vadd.f32 %v121, %v143
    %s146 = sld [smem:[#allocation2 + $0xe]]
    %v147 = vstv %s146
    %v148 = vmul.f32 %v147, %v48
    %150 = vrot.lane.b32.xlu0 %v148, 124
    %v151 = vpop.permute.xlu0 %150
    %v153 = vadd.f32 %v129, %v151
    %s154 = sld [smem:[#allocation2 + $0xf]]
    %v155 = vstv %s154
    %v156 = vadd.f32 %v137, %v155
    %v157 = vmax.f32 %v156, 0.0
    %s158 = sld [smem:[#allocation2 + $0x10]]
    %v159 = vstv %s158
    %v160 = vadd.f32 %v145, %v159
    %v161 = vmax.f32 %v160, 0.0
    %s162 = sld [smem:[#allocation2 + $0x11]]
    %v163 = vstv %s162
    %v164 = vadd.f32 %v153, %v163
    %v165 = vmax.f32 %v164, 0.0
    %v166 = vmul.f32 %v157, 0.0
    %168 = vrot.lane.b32.xlu0 %v157, 2
    %v169 = vpop.permute.xlu0 %168
    %172 = vrot.lane.b32.xlu0 %v166, 18
    %v173 = vpop.permute.xlu0 %172
    %v175 = vsel %vm45, %v166, %v169
    %v176 = vsel %vm47, %v175, %v173
    %178 = vrot.lane.b32.xlu0 %v161, 2
    %v179 = vpop.permute.xlu0 %178
    %v181 = vsel %vm45, %v166, %v179
    %v182 = vsel %vm47, %v181, %v173
    %184 = vrot.lane.b32.xlu0 %v165, 2
    %v185 = vpop.permute.xlu0 %184
    %v187 = vsel %vm45, %v166, %v185
    %v188 = vsel %vm47, %v187, %v173
    %s189 = sld [smem:[#allocation2 + $0x12]]
    %v190 = vstv %s189
    %v191 = vmul.f32 %v190, %v176
    %s192 = sld [smem:[#allocation2 + $0x21]]
    %v193 = vstv %s192
    %v194 = vmul.f32 %v193, %v176
    %s195 = sld [smem:[#allocation2 + $0x30]]
    %v196 = vstv %s195
    %v197 = vmul.f32 %v196, %v176
    %s198 = sld [smem:[#allocation2 + $0x13]]
    %v199 = vstv %s198
    %v200 = vmul.f32 %v199, %v176
    %202 = vrot.lane.b32.xlu0 %v200, 127
    %v203 = vpop.permute.xlu0 %202
    %v205 = vadd.f32 %v191, %v203
    %s206 = sld [smem:[#allocation2 + $0x22]]
    %v207 = vstv %s206
    %v208 = vmul.f32 %v207, %v176
    %210 = vrot.lane.b32.xlu0 %v208, 127
    %v211 = vpop.permute.xlu0 %210
    %v213 = vadd.f32 %v194, %v211
    %s214 = sld [smem:[#allocation2 + $0x31]]
    %v215 = vstv %s214
    %v216 = vmul.f32 %v215, %v176
    %218 = vrot.lane.b32.xlu0 %v216, 127
    %v219 = vpop.permute.xlu0 %218
    %v221 = vadd.f32 %v197, %v219
    %s222 = sld [smem:[#allocation2 + $0x14]]
    %v223 = vstv %s222
    %v224 = vmul.f32 %v223, %v176
    %226 = vrot.lane.b32.xlu0 %v224, 126
    %v227 = vpop.permute.xlu0 %226
    %v229 = vadd.f32 %v205, %v227
    %s230 = sld [smem:[#allocation2 + $0x23]]
    %v231 = vstv %s230
    %v232 = vmul.f32 %v231, %v176
    %234 = vrot.lane.b32.xlu0 %v232, 126
    %v235 = vpop.permute.xlu0 %234
    %v237 = vadd.f32 %v213, %v235
    %s238 = sld [smem:[#allocation2 + $0x32]]
    %v239 = vstv %s238
    %v240 = vmul.f32 %v239, %v176
    %242 = vrot.lane.b32.xlu0 %v240, 126
    %v243 = vpop.permute.xlu0 %242
    %v245 = vadd.f32 %v221, %v243
    %s246 = sld [smem:[#allocation2 + $0x15]]
    %v247 = vstv %s246
    %v248 = vmul.f32 %v247, %v176
    %250 = vrot.lane.b32.xlu0 %v248, 125
    %v251 = vpop.permute.xlu0 %250
    %v253 = vadd.f32 %v229, %v251
    %s254 = sld [smem:[#allocation2 + $0x24]]
    %v255 = vstv %s254
    %v256 = vmul.f32 %v255, %v176
    %258 = vrot.lane.b32.xlu0 %v256, 125
    %v259 = vpop.permute.xlu0 %258
    %v261 = vadd.f32 %v237, %v259
    %s262 = sld [smem:[#allocation2 + $0x33]]
    %v263 = vstv %s262
    %v264 = vmul.f32 %v263, %v176
    %266 = vrot.lane.b32.xlu0 %v264, 125
    %v267 = vpop.permute.xlu0 %266
    %v269 = vadd.f32 %v245, %v267
    %s270 = sld [smem:[#allocation2 + $0x16]]
    %v271 = vstv %s270
    %v272 = vmul.f32 %v271, %v176
    %274 = vrot.lane.b32.xlu0 %v272, 124
    %v275 = vpop.permute.xlu0 %274
    %v277 = vadd.f32 %v253, %v275
    %s278 = sld [smem:[#allocation2 + $0x25]]
    %v279 = vstv %s278
    %v280 = vmul.f32 %v279, %v176
    %282 = vrot.lane.b32.xlu0 %v280, 124
    %v283 = vpop.permute.xlu0 %282
    %v285 = vadd.f32 %v261, %v283
    %s286 = sld [smem:[#allocation2 + $0x34]]
    %v287 = vstv %s286
    %v288 = vmul.f32 %v287, %v176
    %290 = vrot.lane.b32.xlu0 %v288, 124
    %v291 = vpop.permute.xlu0 %290
    %v293 = vadd.f32 %v269, %v291
    %s294 = sld [smem:[#allocation2 + $0x17]]
    %v295 = vstv %s294
    %v296 = vmul.f32 %v295, %v182
    %v297 = vadd.f32 %v277, %v296
    %s298 = sld [smem:[#allocation2 + $0x26]]
    %v299 = vstv %s298
    %v300 = vmul.f32 %v299, %v182
    %v301 = vadd.f32 %v285, %v300
    %s302 = sld [smem:[#allocation2 + $0x35]]
    %v303 = vstv %s302
    %v304 = vmul.f32 %v303, %v182
    %v305 = vadd.f32 %v293, %v304
    %s306 = sld [smem:[#allocation2 + $0x18]]
    %v307 = vstv %s306
    %v308 = vmul.f32 %v307, %v182
    %310 = vrot.lane.b32.xlu0 %v308, 127
    %v311 = vpop.permute.xlu0 %310
    %v313 = vadd.f32 %v297, %v311
    %s314 = sld [smem:[#allocation2 + $0x27]]
    %v315 = vstv %s314
    %v316 = vmul.f32 %v315, %v182
    %318 = vrot.lane.b32.xlu0 %v316, 127
    %v319 = vpop.permute.xlu0 %318
    %v321 = vadd.f32 %v301, %v319
    %s322 = sld [smem:[#allocation2 + $0x36]]
    %v323 = vstv %s322
    %v324 = vmul.f32 %v323, %v182
    %326 = vrot.lane.b32.xlu0 %v324, 127
    %v327 = vpop.permute.xlu0 %326
    %v329 = vadd.f32 %v305, %v327
    %s330 = sld [smem:[#allocation2 + $0x19]]
    %v331 = vstv %s330
    %v332 = vmul.f32 %v331, %v182
    %334 = vrot.lane.b32.xlu0 %v332, 126
    %v335 = vpop.permute.xlu0 %334
    %v337 = vadd.f32 %v313, %v335
    %s338 = sld [smem:[#allocation2 + $0x28]]
    %v339 = vstv %s338
    %v340 = vmul.f32 %v339, %v182
    %342 = vrot.lane.b32.xlu0 %v340, 126
    %v343 = vpop.permute.xlu0 %342
    %v345 = vadd.f32 %v321, %v343
    %s346 = sld [smem:[#allocation2 + $0x37]]
    %v347 = vstv %s346
    %v348 = vmul.f32 %v347, %v182
    %350 = vrot.lane.b32.xlu0 %v348, 126
    %v351 = vpop.permute.xlu0 %350
    %v353 = vadd.f32 %v329, %v351
    %s354 = sld [smem:[#allocation2 + $0x1a]]
    %v355 = vstv %s354
    %v356 = vmul.f32 %v355, %v182
    %358 = vrot.lane.b32.xlu0 %v356, 125
    %v359 = vpop.permute.xlu0 %358
    %v361 = vadd.f32 %v337, %v359
    %s362 = sld [smem:[#allocation2 + $0x29]]
    %v363 = vstv %s362
    %v364 = vmul.f32 %v363, %v182
    %366 = vrot.lane.b32.xlu0 %v364, 125
    %v367 = vpop.permute.xlu0 %366
    %v369 = vadd.f32 %v345, %v367
    %s370 = sld [smem:[#allocation2 + $0x38]]
    %v371 = vstv %s370
    %v372 = vmul.f32 %v371, %v182
    %374 = vrot.lane.b32.xlu0 %v372, 125
    %v375 = vpop.permute.xlu0 %374
    %v377 = vadd.f32 %v353, %v375
    %s378 = sld [smem:[#allocation2 + $0x1b]]
    %v379 = vstv %s378
    %v380 = vmul.f32 %v379, %v182
    %382 = vrot.lane.b32.xlu0 %v380, 124
    %v383 = vpop.permute.xlu0 %382
    %v385 = vadd.f32 %v361, %v383
    %s386 = sld [smem:[#allocation2 + $0x2a]]
    %v387 = vstv %s386
    %v388 = vmul.f32 %v387, %v182
    %390 = vrot.lane.b32.xlu0 %v388, 124
    %v391 = vpop.permute.xlu0 %390
    %v393 = vadd.f32 %v369, %v391
    %s394 = sld [smem:[#allocation2 + $0x39]]
    %v395 = vstv %s394
    %v396 = vmul.f32 %v395, %v182
    %398 = vrot.lane.b32.xlu0 %v396, 124
    %v399 = vpop.permute.xlu0 %398
    %v401 = vadd.f32 %v377, %v399
    %s402 = sld [smem:[#allocation2 + $0x1c]]
    %v403 = vstv %s402
    %v404 = vmul.f32 %v403, %v188
    %v405 = vadd.f32 %v385, %v404
    %s406 = sld [smem:[#allocation2 + $0x2b]]
    %v407 = vstv %s406
    %v408 = vmul.f32 %v407, %v188
    %v409 = vadd.f32 %v393, %v408
    %s410 = sld [smem:[#allocation2 + $0x3a]]
    %v411 = vstv %s410
    %v412 = vmul.f32 %v411, %v188
    %v413 = vadd.f32 %v401, %v412
    %s414 = sld [smem:[#allocation2 + $0x1d]]
    %v415 = vstv %s414
    %v416 = vmul.f32 %v415, %v188
    %418 = vrot.lane.b32.xlu0 %v416, 127
    %v419 = vpop.permute.xlu0 %418
    %v421 = vadd.f32 %v405, %v419
    %s422 = sld [smem:[#allocation2 + $0x2c]]
    %v423 = vstv %s422
    %v424 = vmul.f32 %v423, %v188
    %426 = vrot.lane.b32.xlu0 %v424, 127
    %v427 = vpop.permute.xlu0 %426
    %v429 = vadd.f32 %v409, %v427
    %s430 = sld [smem:[#allocation2 + $0x3b]]
    %v431 = vstv %s430
    %v432 = vmul.f32 %v431, %v188
    %434 = vrot.lane.b32.xlu0 %v432, 127
    %v435 = vpop.permute.xlu0 %434
    %v437 = vadd.f32 %v413, %v435
    %s438 = sld [smem:[#allocation2 + $0x1e]]
    %v439 = vstv %s438
    %v440 = vmul.f32 %v439, %v188
    %442 = vrot.lane.b32.xlu0 %v440, 126
    %v443 = vpop.permute.xlu0 %442
    %v445 = vadd.f32 %v421, %v443
    %s446 = sld [smem:[#allocation2 + $0x2d]]
    %v447 = vstv %s446
    %v448 = vmul.f32 %v447, %v188
    %450 = vrot.lane.b32.xlu0 %v448, 126
    %v451 = vpop.permute.xlu0 %450
    %v453 = vadd.f32 %v429, %v451
    %s454 = sld [smem:[#allocation2 + $0x3c]]
    %v455 = vstv %s454
    %v456 = vmul.f32 %v455, %v188
    %458 = vrot.lane.b32.xlu0 %v456, 126
    %v459 = vpop.permute.xlu0 %458
    %v461 = vadd.f32 %v437, %v459
    %s462 = sld [smem:[#allocation2 + $0x1f]]
    %v463 = vstv %s462
    %v464 = vmul.f32 %v463, %v188
    %466 = vrot.lane.b32.xlu0 %v464, 125
    %v467 = vpop.permute.xlu0 %466
    %v469 = vadd.f32 %v445, %v467
    %s470 = sld [smem:[#allocation2 + $0x2e]]
    %v471 = vstv %s470
    %v472 = vmul.f32 %v471, %v188
    %474 = vrot.lane.b32.xlu0 %v472, 125
    %v475 = vpop.permute.xlu0 %474
    %v477 = vadd.f32 %v453, %v475
    %s478 = sld [smem:[#allocation2 + $0x3d]]
    %v479 = vstv %s478
    %v480 = vmul.f32 %v479, %v188
    %482 = vrot.lane.b32.xlu0 %v480, 125
    %v483 = vpop.permute.xlu0 %482
    %v485 = vadd.f32 %v461, %v483
    %s486 = sld [smem:[#allocation2 + $0x20]]
    %v487 = vstv %s486
    %v488 = vmul.f32 %v487, %v188
    %490 = vrot.lane.b32.xlu0 %v488, 124
    %v491 = vpop.permute.xlu0 %490
    %v493 = vadd.f32 %v469, %v491
    %s494 = sld [smem:[#allocation2 + $0x2f]]
    %v495 = vstv %s494
    %v496 = vmul.f32 %v495, %v188
    %498 = vrot.lane.b32.xlu0 %v496, 124
    %v499 = vpop.permute.xlu0 %498
    %v501 = vadd.f32 %v477, %v499
    %s502 = sld [smem:[#allocation2 + $0x3e]]
    %v503 = vstv %s502
    %v504 = vmul.f32 %v503, %v188
    %506 = vrot.lane.b32.xlu0 %v504, 124
    %v507 = vpop.permute.xlu0 %506
    %v509 = vadd.f32 %v485, %v507
    %s510 = sld [smem:[#allocation2 + $0x3f]]
    %v511 = vstv %s510
    %v512 = vadd.f32 %v493, %v511
    %v513 = vmax.f32 %v512, 0.0
    %s514 = sld [smem:[#allocation2 + $0x40]]
    %v515 = vstv %s514
    %v516 = vadd.f32 %v501, %v515
    %v517 = vmax.f32 %v516, 0.0
    %s518 = sld [smem:[#allocation2 + $0x41]]
    %v519 = vstv %s518
    %v520 = vadd.f32 %v509, %v519
    %v521 = vmax.f32 %v520, 0.0
    %v522 = vmul.f32 %v513, 0.0
    %524 = vrot.lane.b32.xlu0 %v513, 2
    %v525 = vpop.permute.xlu0 %524
    %528 = vrot.lane.b32.xlu0 %v522, 18
    %v529 = vpop.permute.xlu0 %528
    %v531 = vsel %vm45, %v522, %v525
    %v532 = vsel %vm47, %v531, %v529
    %534 = vrot.lane.b32.xlu0 %v517, 2
    %v535 = vpop.permute.xlu0 %534
    %v537 = vsel %vm45, %v522, %v535
    %v538 = vsel %vm47, %v537, %v529
    %540 = vrot.lane.b32.xlu0 %v521, 2
    %v541 = vpop.permute.xlu0 %540
    %v543 = vsel %vm45, %v522, %v541
    %v544 = vsel %vm47, %v543, %v529
    %s545 = sld [smem:[#allocation2 + $0x42]]
    %v546 = vstv %s545
    %v547 = vmul.f32 %v546, %v532
    %s548 = sld [smem:[#allocation2 + $0x51]]
    %v549 = vstv %s548
    %v550 = vmul.f32 %v549, %v532
    %s551 = sld [smem:[#allocation2 + $0x60]]
    %v552 = vstv %s551
    %v553 = vmul.f32 %v552, %v532
    %s554 = sld [smem:[#allocation2 + $0x43]]
    %v555 = vstv %s554
    %v556 = vmul.f32 %v555, %v532
    %558 = vrot.lane.b32.xlu0 %v556, 127
    %v559 = vpop.permute.xlu0 %558
    %v561 = vadd.f32 %v547, %v559
    %s562 = sld [smem:[#allocation2 + $0x52]]
    %v563 = vstv %s562
    %v564 = vmul.f32 %v563, %v532
    %566 = vrot.lane.b32.xlu0 %v564, 127
    %v567 = vpop.permute.xlu0 %566
    %v569 = vadd.f32 %v550, %v567
    %s570 = sld [smem:[#allocation2 + $0x61]]
    %v571 = vstv %s570
    %v572 = vmul.f32 %v571, %v532
    %574 = vrot.lane.b32.xlu0 %v572, 127
    %v575 = vpop.permute.xlu0 %574
    %v577 = vadd.f32 %v553, %v575
    %s578 = sld [smem:[#allocation2 + $0x44]]
    %v579 = vstv %s578
    %v580 = vmul.f32 %v579, %v532
    %582 = vrot.lane.b32.xlu0 %v580, 126
    %v583 = vpop.permute.xlu0 %582
    %v585 = vadd.f32 %v561, %v583
    %s586 = sld [smem:[#allocation2 + $0x53]]
    %v587 = vstv %s586
    %v588 = vmul.f32 %v587, %v532
    %590 = vrot.lane.b32.xlu0 %v588, 126
    %v591 = vpop.permute.xlu0 %590
    %v593 = vadd.f32 %v569, %v591
    %s594 = sld [smem:[#allocation2 + $0x62]]
    %v595 = vstv %s594
    %v596 = vmul.f32 %v595, %v532
    %598 = vrot.lane.b32.xlu0 %v596, 126
    %v599 = vpop.permute.xlu0 %598
    %v601 = vadd.f32 %v577, %v599
    %s602 = sld [smem:[#allocation2 + $0x45]]
    %v603 = vstv %s602
    %v604 = vmul.f32 %v603, %v532
    %606 = vrot.lane.b32.xlu0 %v604, 125
    %v607 = vpop.permute.xlu0 %606
    %v609 = vadd.f32 %v585, %v607
    %s610 = sld [smem:[#allocation2 + $0x54]]
    %v611 = vstv %s610
    %v612 = vmul.f32 %v611, %v532
    %614 = vrot.lane.b32.xlu0 %v612, 125
    %v615 = vpop.permute.xlu0 %614
    %v617 = vadd.f32 %v593, %v615
    %s618 = sld [smem:[#allocation2 + $0x63]]
    %v619 = vstv %s618
    %v620 = vmul.f32 %v619, %v532
    %622 = vrot.lane.b32.xlu0 %v620, 125
    %v623 = vpop.permute.xlu0 %622
    %v625 = vadd.f32 %v601, %v623
    %s626 = sld [smem:[#allocation2 + $0x46]]
    %v627 = vstv %s626
    %v628 = vmul.f32 %v627, %v532
    %630 = vrot.lane.b32.xlu0 %v628, 124
    %v631 = vpop.permute.xlu0 %630
    %v633 = vadd.f32 %v609, %v631
    %s634 = sld [smem:[#allocation2 + $0x55]]
    %v635 = vstv %s634
    %v636 = vmul.f32 %v635, %v532
    %638 = vrot.lane.b32.xlu0 %v636, 124
    %v639 = vpop.permute.xlu0 %638
    %v641 = vadd.f32 %v617, %v639
    %s642 = sld [smem:[#allocation2 + $0x64]]
    %v643 = vstv %s642
    %v644 = vmul.f32 %v643, %v532
    %646 = vrot.lane.b32.xlu0 %v644, 124
    %v647 = vpop.permute.xlu0 %646
    %v649 = vadd.f32 %v625, %v647
    %s650 = sld [smem:[#allocation2 + $0x47]]
    %v651 = vstv %s650
    %v652 = vmul.f32 %v651, %v538
    %v653 = vadd.f32 %v633, %v652
    %s654 = sld [smem:[#allocation2 + $0x56]]
    %v655 = vstv %s654
    %v656 = vmul.f32 %v655, %v538
    %v657 = vadd.f32 %v641, %v656
    %s658 = sld [smem:[#allocation2 + $0x65]]
    %v659 = vstv %s658
    %v660 = vmul.f32 %v659, %v538
    %v661 = vadd.f32 %v649, %v660
    %s662 = sld [smem:[#allocation2 + $0x48]]
    %v663 = vstv %s662
    %v664 = vmul.f32 %v663, %v538
    %666 = vrot.lane.b32.xlu0 %v664, 127
    %v667 = vpop.permute.xlu0 %666
    %v669 = vadd.f32 %v653, %v667
    %s670 = sld [smem:[#allocation2 + $0x57]]
    %v671 = vstv %s670
    %v672 = vmul.f32 %v671, %v538
    %674 = vrot.lane.b32.xlu0 %v672, 127
    %v675 = vpop.permute.xlu0 %674
    %v677 = vadd.f32 %v657, %v675
    %s678 = sld [smem:[#allocation2 + $0x66]]
    %v679 = vstv %s678
    %v680 = vmul.f32 %v679, %v538
    %682 = vrot.lane.b32.xlu0 %v680, 127
    %v683 = vpop.permute.xlu0 %682
    %v685 = vadd.f32 %v661, %v683
    %s686 = sld [smem:[#allocation2 + $0x49]]
    %v687 = vstv %s686
    %v688 = vmul.f32 %v687, %v538
    %690 = vrot.lane.b32.xlu0 %v688, 126
    %v691 = vpop.permute.xlu0 %690
    %v693 = vadd.f32 %v669, %v691
    %s694 = sld [smem:[#allocation2 + $0x58]]
    %v695 = vstv %s694
    %v696 = vmul.f32 %v695, %v538
    %698 = vrot.lane.b32.xlu0 %v696, 126
    %v699 = vpop.permute.xlu0 %698
    %v701 = vadd.f32 %v677, %v699
    %s702 = sld [smem:[#allocation2 + $0x67]]
    %v703 = vstv %s702
    %v704 = vmul.f32 %v703, %v538
    %706 = vrot.lane.b32.xlu0 %v704, 126
    %v707 = vpop.permute.xlu0 %706
    %v709 = vadd.f32 %v685, %v707
    %s710 = sld [smem:[#allocation2 + $0x4a]]
    %v711 = vstv %s710
    %v712 = vmul.f32 %v711, %v538
    %714 = vrot.lane.b32.xlu0 %v712, 125
    %v715 = vpop.permute.xlu0 %714
    %v717 = vadd.f32 %v693, %v715
    %s718 = sld [smem:[#allocation2 + $0x59]]
    %v719 = vstv %s718
    %v720 = vmul.f32 %v719, %v538
    %722 = vrot.lane.b32.xlu0 %v720, 125
    %v723 = vpop.permute.xlu0 %722
    %v725 = vadd.f32 %v701, %v723
    %s726 = sld [smem:[#allocation2 + $0x68]]
    %v727 = vstv %s726
    %v728 = vmul.f32 %v727, %v538
    %730 = vrot.lane.b32.xlu0 %v728, 125
    %v731 = vpop.permute.xlu0 %730
    %v733 = vadd.f32 %v709, %v731
    %s734 = sld [smem:[#allocation2 + $0x4b]]
    %v735 = vstv %s734
    %v736 = vmul.f32 %v735, %v538
    %738 = vrot.lane.b32.xlu0 %v736, 124
    %v739 = vpop.permute.xlu0 %738
    %v741 = vadd.f32 %v717, %v739
    %s742 = sld [smem:[#allocation2 + $0x5a]]
    %v743 = vstv %s742
    %v744 = vmul.f32 %v743, %v538
    %746 = vrot.lane.b32.xlu0 %v744, 124
    %v747 = vpop.permute.xlu0 %746
    %v749 = vadd.f32 %v725, %v747
    %s750 = sld [smem:[#allocation2 + $0x69]]
    %v751 = vstv %s750
    %v752 = vmul.f32 %v751, %v538
    %754 = vrot.lane.b32.xlu0 %v752, 124
    %v755 = vpop.permute.xlu0 %754
    %v757 = vadd.f32 %v733, %v755
    %s758 = sld [smem:[#allocation2 + $0x4c]]
    %v759 = vstv %s758
    %v760 = vmul.f32 %v759, %v544
    %v761 = vadd.f32 %v741, %v760
    %s762 = sld [smem:[#allocation2 + $0x5b]]
    %v763 = vstv %s762
    %v764 = vmul.f32 %v763, %v544
    %v765 = vadd.f32 %v749, %v764
    %s766 = sld [smem:[#allocation2 + $0x6a]]
    %v767 = vstv %s766
    %v768 = vmul.f32 %v767, %v544
    %v769 = vadd.f32 %v757, %v768
    %s770 = sld [smem:[#allocation2 + $0x4d]]
    %v771 = vstv %s770
    %v772 = vmul.f32 %v771, %v544
    %774 = vrot.lane.b32.xlu0 %v772, 127
    %v775 = vpop.permute.xlu0 %774
    %v777 = vadd.f32 %v761, %v775
    %s778 = sld [smem:[#allocation2 + $0x5c]]
    %v779 = vstv %s778
    %v780 = vmul.f32 %v779, %v544
    %782 = vrot.lane.b32.xlu0 %v780, 127
    %v783 = vpop.permute.xlu0 %782
    %v785 = vadd.f32 %v765, %v783
    %s786 = sld [smem:[#allocation2 + $0x6b]]
    %v787 = vstv %s786
    %v788 = vmul.f32 %v787, %v544
    %790 = vrot.lane.b32.xlu0 %v788, 127
    %v791 = vpop.permute.xlu0 %790
    %v793 = vadd.f32 %v769, %v791
    %s794 = sld [smem:[#allocation2 + $0x4e]]
    %v795 = vstv %s794
    %v796 = vmul.f32 %v795, %v544
    %798 = vrot.lane.b32.xlu0 %v796, 126
    %v799 = vpop.permute.xlu0 %798
    %v801 = vadd.f32 %v777, %v799
    %s802 = sld [smem:[#allocation2 + $0x5d]]
    %v803 = vstv %s802
    %v804 = vmul.f32 %v803, %v544
    %806 = vrot.lane.b32.xlu0 %v804, 126
    %v807 = vpop.permute.xlu0 %806
    %v809 = vadd.f32 %v785, %v807
    %s810 = sld [smem:[#allocation2 + $0x6c]]
    %v811 = vstv %s810
    %v812 = vmul.f32 %v811, %v544
    %814 = vrot.lane.b32.xlu0 %v812, 126
    %v815 = vpop.permute.xlu0 %814
    %v817 = vadd.f32 %v793, %v815
    %s818 = sld [smem:[#allocation2 + $0x4f]]
    %v819 = vstv %s818
    %v820 = vmul.f32 %v819, %v544
    %822 = vrot.lane.b32.xlu0 %v820, 125
    %v823 = vpop.permute.xlu0 %822
    %v825 = vadd.f32 %v801, %v823
    %s826 = sld [smem:[#allocation2 + $0x5e]]
    %v827 = vstv %s826
    %v828 = vmul.f32 %v827, %v544
    %830 = vrot.lane.b32.xlu0 %v828, 125
    %v831 = vpop.permute.xlu0 %830
    %v833 = vadd.f32 %v809, %v831
    %s834 = sld [smem:[#allocation2 + $0x6d]]
    %v835 = vstv %s834
    %v836 = vmul.f32 %v835, %v544
    %838 = vrot.lane.b32.xlu0 %v836, 125
    %v839 = vpop.permute.xlu0 %838
    %v841 = vadd.f32 %v817, %v839
    %s842 = sld [smem:[#allocation2 + $0x50]]
    %v843 = vstv %s842
    %v844 = vmul.f32 %v843, %v544
    %846 = vrot.lane.b32.xlu0 %v844, 124
    %v847 = vpop.permute.xlu0 %846
    %v849 = vadd.f32 %v825, %v847
    %s850 = sld [smem:[#allocation2 + $0x5f]]
    %v851 = vstv %s850
    %v852 = vmul.f32 %v851, %v544
    %854 = vrot.lane.b32.xlu0 %v852, 124
    %v855 = vpop.permute.xlu0 %854
    %v857 = vadd.f32 %v833, %v855
    %s858 = sld [smem:[#allocation2 + $0x6e]]
    %v859 = vstv %s858
    %v860 = vmul.f32 %v859, %v544
    %862 = vrot.lane.b32.xlu0 %v860, 124
    %v863 = vpop.permute.xlu0 %862
    %v865 = vadd.f32 %v841, %v863
    %s866 = sld [smem:[#allocation2 + $0x6f]]
    %v867 = vstv %s866
    %v868 = vadd.f32 %v849, %v867
    %v869 = vmax.f32 %v868, 0.0
    %s870 = sld [smem:[#allocation2 + $0x70]]
    %v871 = vstv %s870
    %v872 = vadd.f32 %v857, %v871
    %v873 = vmax.f32 %v872, 0.0
    %s874 = sld [smem:[#allocation2 + $0x71]]
    %v875 = vstv %s874
    %v876 = vadd.f32 %v865, %v875
    %v877 = vmax.f32 %v876, 0.0
    %vm878 = vcmask 72704
    %879 = vst.msk [vmem:[#allocation7] sm:$0xff] %vm878, %v869
    %881 = vrot.lane.b32.xlu0 %v869, 127
    %v882 = vpop.permute.xlu0 %881
    %vm884 = vcmask 113736
    %885 = vst.msk [vmem:[#allocation7] sm:$0xff] %vm884, %v882
    %887 = vrot.lane.b32.xlu0 %v873, 14
    %v888 = vpop.permute.xlu0 %887
    %vm890 = vcmask 187504
    %891 = vst.msk [vmem:[#allocation7] sm:$0xff] %vm890, %v888
    %892 = vrot.lane.b32.xlu0 %v873, 13
    %v893 = vpop.permute.xlu0 %892
    %vm895 = vcmask 228536
    %896 = vst.msk [vmem:[#allocation7] sm:$0xff] %vm895, %v893
    %898 = vrot.lane.b32.xlu0 %v877, 28
    %v899 = vpop.permute.xlu0 %898
    %vm901 = vcmask 302304
    %902 = vst.msk [vmem:[#allocation7] sm:$0xff] %vm901, %v899
    %903 = vrot.lane.b32.xlu0 %v877, 27
    %v904 = vpop.permute.xlu0 %903
    %vm906 = vcmask 343336
    %907 = vst.msk [vmem:[#allocation7] sm:$0xff] %vm906, %v904
    // Predicated region
    $region18: #{tpu_custom_call.1} parent=1 // pred_check
      _
    $region19: #{tpu_custom_call.1} parent=1 // pred_check_branch
      %909 = sbr.rel (0) target = $region21
    $region20: #{tpu_custom_call.1} parent=1 // pred_region
      %s911 = ssub.s32 128, 128
      %912 = vsyncadd [#allocation4], %s911
      %s914 = sshll.u32 [#allocation7], 4
      %s915 = int_to_ptr.vmem [resolvable:$true] %s914
      %917 = dma.vmem_to_hbm [thread:$0]  %s915, 128, %s2, [#allocation4]
    $region21: #{tpu_custom_call.1} parent=1 // pred_fallthru
      _
    // Predicated region
    $region22: #{tpu_custom_call.1} parent=1 // pred_check
      _
    $region23: #{tpu_custom_call.1} parent=1 // pred_check_branch
      %919 = sbr.rel (0) target = $region25
    $region24: #{tpu_custom_call.1} parent=1 // pred_region
      %920 = dma.done [#allocation4], 128
    $region25: #{tpu_custom_call.1} parent=1 // pred_fallthru
      _
    %921 = vsyncpa [#allocation3], 1
    %922 = vsyncpa [#allocation4], 1
    %923 = vsyncpa [#allocation5], 1

</llo_original>
